<compile_context>
chip_gen: v7x
topology: tpu7x:2x2x1
jax: 0.10.0
libtpu: 0.0.40
codegen_flags: <defaults>
</compile_context>

<pallas_src>
import math

import jax
import jax.numpy as jnp
from jax.experimental import pallas as pl
from jax.experimental.pallas import tpu as pltpu

BN_EPS = 1e-5
SQRT_HALF = math.sqrt(0.5)


def _pick_chunks_per_tile(n_chunks, vbs, target_rows=512):
    """Largest divisor of n_chunks whose tile stays <= target_rows rows,
    preferring >= 2 grid steps so v7x can shard the batch axis across TCs."""
    divisors = [d for d in range(1, n_chunks + 1) if n_chunks % d == 0]
    fits = [d for d in divisors if d * vbs <= target_rows] or [1]
    multi = [d for d in fits if n_chunks // d >= 2]
    return max(multi) if multi else max(fits)


def glu_block_forward(x, params, *, first, virtual_batch_size, output_dim,
                      use_bf16_matmul=False):
    """Fused GLU_Block forward.

    x:      [B, input_dim] float32
    params: list (per GLU layer) of (W_a, W_b, gamma_a, gamma_b, beta_a, beta_b)
            W_a/W_b are the transposed halves of the PyTorch Linear weight,
            i.e. W_a = W.T[:, :output_dim], W_b = W.T[:, output_dim:].
    Returns [B, output_dim] float32.
    """
    B, input_dim = x.shape
    vbs = int(virtual_batch_size)
    n_glu = len(params)
    assert B % vbs == 0, "batch must be a multiple of the virtual batch size"
    n_chunks = B // vbs
    C = _pick_chunks_per_tile(n_chunks, vbs)
    tile_rows = C * vbs
    n_tiles = n_chunks // C
    if not first:
        assert input_dim == output_dim, "first=False requires input_dim == output_dim"

    compute_dtype = jnp.bfloat16 if use_bf16_matmul else jnp.float32

    def kernel(*refs):
        x_ref = refs[0]
        o_ref = refs[-1]
        layer_refs = refs[1:-1]

        h = x_ref[...].astype(jnp.float32)            # [tile_rows, in_dim]
        inv_vbs = jnp.float32(1.0 / vbs)

        for l in range(n_glu):
            wa_ref, wb_ref, ga_ref, gb_ref, ba_ref, bb_ref = \
                layer_refs[6 * l:6 * l + 6]

            # Linear (no bias): two lane-aligned halves on the MXU.
            hm = h.astype(compute_dtype)
            ya = jnp.dot(hm, wa_ref[...].astype(compute_dtype),
                         preferred_element_type=jnp.float32)
            yb = jnp.dot(hm, wb_ref[...].astype(compute_dtype),
                         preferred_element_type=jnp.float32)

            # Ghost BatchNorm per virtual-batch chunk (biased variance).
            ya3 = ya.reshape(C, vbs, output_dim)
            yb3 = yb.reshape(C, vbs, output_dim)

            mean_a = jnp.sum(ya3, axis=1, keepdims=True) * inv_vbs
            var_a = jnp.sum(jnp.square(ya3 - mean_a), axis=1,
                            keepdims=True) * inv_vbs
            mean_b = jnp.sum(yb3, axis=1, keepdims=True) * inv_vbs
            var_b = jnp.sum(jnp.square(yb3 - mean_b), axis=1,
                            keepdims=True) * inv_vbs

            # BN folded into a single FMA per element.
            scale_a = ga_ref[...] * jax.lax.rsqrt(var_a + BN_EPS)
            shift_a = ba_ref[...] - mean_a * scale_a
            scale_b = gb_ref[...] * jax.lax.rsqrt(var_b + BN_EPS)
            shift_b = bb_ref[...] - mean_b * scale_b
            a_bn = ya3 * scale_a + shift_a
            b_bn = yb3 * scale_b + shift_b

            # GLU gate.
            out = (a_bn * jax.nn.sigmoid(b_bn)).reshape(tile_rows, output_dim)

            if l == 0 and first:
                h = out
            else:
                h = (h + out) * jnp.float32(SQRT_HALF)

        o_ref[...] = h.astype(o_ref.dtype)

    # BlockSpecs: batch tiled; every parameter is a full (tiny) VMEM-resident block.
    in_specs = [pl.BlockSpec((tile_rows, input_dim), lambda i: (i, 0))]
    args = [x]
    for layer_params in params:
        for p in layer_params:
            in_specs.append(pl.BlockSpec(p.shape, lambda i: (0, 0)))
            args.append(p)

    return pl.pallas_call(
        kernel,
        out_shape=jax.ShapeDtypeStruct((B, output_dim), x.dtype),
        grid=(n_tiles,),
        in_specs=in_specs,
        out_specs=pl.BlockSpec((tile_rows, output_dim), lambda i: (i, 0)),
        compiler_params=pltpu.CompilerParams(
            dimension_semantics=("parallel",)),
    )(*args)


def init_glu_params(key, input_dim, output_dim, n_glu):
    """Matches initialize_glu: xavier_normal_ with gain sqrt((in+2*out)/sqrt(in)).

    Weights are stored transposed and pre-split into the two GLU halves."""
    params = []
    in_dim = input_dim
    for _ in range(n_glu):
        key, sub = jax.random.split(key)
        out2 = 2 * output_dim
        gain = math.sqrt((in_dim + out2) / math.sqrt(in_dim))
        std = gain * math.sqrt(2.0 / (in_dim + out2))
        w_t = jax.random.normal(sub, (in_dim, out2), dtype=jnp.float32) * std
        wa = w_t[:, :output_dim]
        wb = w_t[:, output_dim:]
        ga = jnp.ones((1, output_dim), jnp.float32)    # BatchNorm1d default gamma
        gb = jnp.ones((1, output_dim), jnp.float32)
        ba = jnp.zeros((1, output_dim), jnp.float32)   # BatchNorm1d default beta
        bb = jnp.zeros((1, output_dim), jnp.float32)
        params.append((wa, wb, ga, gb, ba, bb))
        in_dim = output_dim
    return params


def glu_block_reference(x, params, *, first, virtual_batch_size, output_dim):
    """Pure-JAX reference (mirrors the PyTorch module in training mode)."""
    def glu_layer(h, p):
        wa, wb, ga, gb, ba, bb = p
        w_t = jnp.concatenate([wa, wb], axis=1)
        gamma = jnp.concatenate([ga, gb], axis=1)
        beta = jnp.concatenate([ba, bb], axis=1)
        y = h @ w_t
        b = h.shape[0]
        y = y.reshape(b // virtual_batch_size, virtual_batch_size, 2 * output_dim)
        mean = jnp.mean(y, axis=1, keepdims=True)
        var = jnp.mean(jnp.square(y - mean), axis=1, keepdims=True)
        y = (y - mean) / jnp.sqrt(var + BN_EPS) * gamma + beta
        y = y.reshape(b, 2 * output_dim)
        return y[:, :output_dim] * jax.nn.sigmoid(y[:, output_dim:])

    n_glu = len(params)
    if first:
        x = glu_layer(x, params[0])
        layers_left = range(1, n_glu)
    else:
        layers_left = range(n_glu)
    for glu_id in layers_left:
        x = (x + glu_layer(x, params[glu_id])) * SQRT_HALF
    return x


if __name__ == "__main__":
    # Small, module-consistent shapes (several virtual-batch chunks, 2 grid tiles).
    batch = 64
    input_dim = 16
    output_dim = 16
    n_glu = 2
    first = True
    virtual_batch_size = 8   # 8 ghost-batch chunks -> 4 chunks/tile, grid=(2,)

    key = jax.random.PRNGKey(0)
    key, xkey = jax.random.split(key)
    x = jax.random.normal(xkey, (batch, input_dim), dtype=jnp.float32)

    params = init_glu_params(key, input_dim, output_dim, n_glu)

    out = glu_block_forward(
        x, params,
        first=first,
        virtual_batch_size=virtual_batch_size,
        output_dim=output_dim,
    )
    out = jax.block_until_ready(out)
    assert out.shape == (batch, output_dim)
    assert bool(jnp.all(jnp.isfinite(out)))

    ref = glu_block_reference(
        x, params,
        first=first,
        virtual_batch_size=virtual_batch_size,
        output_dim=output_dim,
    )
    assert bool(jnp.allclose(out, ref, atol=1e-4, rtol=1e-4))

    print("KERNEL_OK")
</pallas_src>

<mosaic_0001>
module attributes {stable_mosaic.version = 11 : i64} {
  func.func @kernel(%arg0: i32, %arg1: memref<32x16xf32, #tpu.memory_space<vmem>>, %arg2: memref<16x16xf32, #tpu.memory_space<vmem>>, %arg3: memref<16x16xf32, #tpu.memory_space<vmem>>, %arg4: memref<1x16xf32, #tpu.memory_space<vmem>>, %arg5: memref<1x16xf32, #tpu.memory_space<vmem>>, %arg6: memref<1x16xf32, #tpu.memory_space<vmem>>, %arg7: memref<1x16xf32, #tpu.memory_space<vmem>>, %arg8: memref<16x16xf32, #tpu.memory_space<vmem>>, %arg9: memref<16x16xf32, #tpu.memory_space<vmem>>, %arg10: memref<1x16xf32, #tpu.memory_space<vmem>>, %arg11: memref<1x16xf32, #tpu.memory_space<vmem>>, %arg12: memref<1x16xf32, #tpu.memory_space<vmem>>, %arg13: memref<1x16xf32, #tpu.memory_space<vmem>>, %arg14: memref<32x16xf32, #tpu.memory_space<vmem>>) attributes {dimension_semantics = [#tpu.dimension_semantics<parallel>], iteration_bounds = array<i64: 2>, scalar_prefetch = 0 : i64, scratch_operands = 0 : i64, tpu.core_type = #tpu.core_type<tc>, window_params = [{transform_indices = @transform_0, window_bounds = array<i64: 32, 16>}, {pipeline_mode = #tpu.pipeline_mode<synchronous>, transform_indices = @transform_1, window_bounds = array<i64: 16, 16>}, {pipeline_mode = #tpu.pipeline_mode<synchronous>, transform_indices = @transform_2, window_bounds = array<i64: 16, 16>}, {pipeline_mode = #tpu.pipeline_mode<synchronous>, transform_indices = @transform_3, window_bounds = array<i64: 1, 16>}, {pipeline_mode = #tpu.pipeline_mode<synchronous>, transform_indices = @transform_4, window_bounds = array<i64: 1, 16>}, {pipeline_mode = #tpu.pipeline_mode<synchronous>, transform_indices = @transform_5, window_bounds = array<i64: 1, 16>}, {pipeline_mode = #tpu.pipeline_mode<synchronous>, transform_indices = @transform_6, window_bounds = array<i64: 1, 16>}, {pipeline_mode = #tpu.pipeline_mode<synchronous>, transform_indices = @transform_7, window_bounds = array<i64: 16, 16>}, {pipeline_mode = #tpu.pipeline_mode<synchronous>, transform_indices = @transform_8, window_bounds = array<i64: 16, 16>}, {pipeline_mode = #tpu.pipeline_mode<synchronous>, transform_indices = @transform_9, window_bounds = array<i64: 1, 16>}, {pipeline_mode = #tpu.pipeline_mode<synchronous>, transform_indices = @transform_10, window_bounds = array<i64: 1, 16>}, {pipeline_mode = #tpu.pipeline_mode<synchronous>, transform_indices = @transform_11, window_bounds = array<i64: 1, 16>}, {pipeline_mode = #tpu.pipeline_mode<synchronous>, transform_indices = @transform_12, window_bounds = array<i64: 1, 16>}, {transform_indices = @transform_13, window_bounds = array<i64: 32, 16>}]} {
    %c0 = arith.constant 0 : index
    %c0_0 = arith.constant 0 : index
    %0 = vector.load %arg1[%c0, %c0_0] : memref<32x16xf32, #tpu.memory_space<vmem>>, vector<32x16xf32>
    %c0_1 = arith.constant 0 : index
    %c0_2 = arith.constant 0 : index
    %1 = vector.load %arg2[%c0_1, %c0_2] : memref<16x16xf32, #tpu.memory_space<vmem>>, vector<16x16xf32>
    %cst = arith.constant dense<0.000000e+00> : vector<32x16xf32>
    %2 = tpu.matmul %0, %1, %cst {dimension_numbers = #tpu.dot_dimension_numbers<[1], [0], [0], [1], [0, 0, 1, 1], [], []>} : vector<32x16xf32>, vector<16x16xf32>, vector<32x16xf32> -> vector<32x16xf32>
    %c0_3 = arith.constant 0 : index
    %c0_4 = arith.constant 0 : index
    %3 = vector.load %arg3[%c0_3, %c0_4] : memref<16x16xf32, #tpu.memory_space<vmem>>, vector<16x16xf32>
    %cst_5 = arith.constant dense<0.000000e+00> : vector<32x16xf32>
    %4 = tpu.matmul %0, %3, %cst_5 {dimension_numbers = #tpu.dot_dimension_numbers<[1], [0], [0], [1], [0, 0, 1, 1], [], []>} : vector<32x16xf32>, vector<16x16xf32>, vector<32x16xf32> -> vector<32x16xf32>
    %5 = vector.shape_cast %2 : vector<32x16xf32> to vector<4x8x16xf32>
    %6 = vector.shape_cast %4 : vector<32x16xf32> to vector<4x8x16xf32>
    %cst_6 = arith.constant dense<0.000000e+00> : vector<4x16xf32>
    %7 = vector.multi_reduction <add>, %5, %cst_6 [1] : vector<4x8x16xf32> to vector<4x16xf32>
    %8 = vector.shape_cast %7 : vector<4x16xf32> to vector<4x1x16xf32>
    %cst_7 = arith.constant 1.250000e-01 : f32
    %9 = vector.broadcast %cst_7 : f32 to vector<4x1x16xf32>
    %10 = arith.mulf %8, %9 : vector<4x1x16xf32>
    %11 = vector.broadcast %10 : vector<4x1x16xf32> to vector<4x8x16xf32>
    %12 = arith.subf %5, %11 : vector<4x8x16xf32>
    %13 = arith.mulf %12, %12 : vector<4x8x16xf32>
    %cst_8 = arith.constant dense<0.000000e+00> : vector<4x16xf32>
    %14 = vector.multi_reduction <add>, %13, %cst_8 [1] : vector<4x8x16xf32> to vector<4x16xf32>
    %15 = vector.shape_cast %14 : vector<4x16xf32> to vector<4x1x16xf32>
    %cst_9 = arith.constant 1.250000e-01 : f32
    %16 = vector.broadcast %cst_9 : f32 to vector<4x1x16xf32>
    %17 = arith.mulf %15, %16 : vector<4x1x16xf32>
    %cst_10 = arith.constant dense<0.000000e+00> : vector<4x16xf32>
    %18 = vector.multi_reduction <add>, %6, %cst_10 [1] : vector<4x8x16xf32> to vector<4x16xf32>
    %19 = vector.shape_cast %18 : vector<4x16xf32> to vector<4x1x16xf32>
    %cst_11 = arith.constant 1.250000e-01 : f32
    %20 = vector.broadcast %cst_11 : f32 to vector<4x1x16xf32>
    %21 = arith.mulf %19, %20 : vector<4x1x16xf32>
    %22 = vector.broadcast %21 : vector<4x1x16xf32> to vector<4x8x16xf32>
    %23 = arith.subf %6, %22 : vector<4x8x16xf32>
    %24 = arith.mulf %23, %23 : vector<4x8x16xf32>
    %cst_12 = arith.constant dense<0.000000e+00> : vector<4x16xf32>
    %25 = vector.multi_reduction <add>, %24, %cst_12 [1] : vector<4x8x16xf32> to vector<4x16xf32>
    %26 = vector.shape_cast %25 : vector<4x16xf32> to vector<4x1x16xf32>
    %cst_13 = arith.constant 1.250000e-01 : f32
    %27 = vector.broadcast %cst_13 : f32 to vector<4x1x16xf32>
    %28 = arith.mulf %26, %27 : vector<4x1x16xf32>
    %c0_14 = arith.constant 0 : index
    %c0_15 = arith.constant 0 : index
    %29 = vector.load %arg4[%c0_14, %c0_15] : memref<1x16xf32, #tpu.memory_space<vmem>>, vector<1x16xf32>
    %cst_16 = arith.constant 9.99999974E-6 : f32
    %30 = vector.broadcast %cst_16 : f32 to vector<4x1x16xf32>
    %31 = arith.addf %17, %30 : vector<4x1x16xf32>
    %32 = math.rsqrt %31 : vector<4x1x16xf32>
    %33 = vector.shape_cast %29 : vector<1x16xf32> to vector<1x1x16xf32>
    %34 = vector.broadcast %33 : vector<1x1x16xf32> to vector<4x1x16xf32>
    %35 = arith.mulf %34, %32 : vector<4x1x16xf32>
    %c0_17 = arith.constant 0 : index
    %c0_18 = arith.constant 0 : index
    %36 = vector.load %arg6[%c0_17, %c0_18] : memref<1x16xf32, #tpu.memory_space<vmem>>, vector<1x16xf32>
    %37 = arith.mulf %10, %35 : vector<4x1x16xf32>
    %38 = vector.shape_cast %36 : vector<1x16xf32> to vector<1x1x16xf32>
    %39 = vector.broadcast %38 : vector<1x1x16xf32> to vector<4x1x16xf32>
    %40 = arith.subf %39, %37 : vector<4x1x16xf32>
    %c0_19 = arith.constant 0 : index
    %c0_20 = arith.constant 0 : index
    %41 = vector.load %arg5[%c0_19, %c0_20] : memref<1x16xf32, #tpu.memory_space<vmem>>, vector<1x16xf32>
    %cst_21 = arith.constant 9.99999974E-6 : f32
    %42 = vector.broadcast %cst_21 : f32 to vector<4x1x16xf32>
    %43 = arith.addf %28, %42 : vector<4x1x16xf32>
    %44 = math.rsqrt %43 : vector<4x1x16xf32>
    %45 = vector.shape_cast %41 : vector<1x16xf32> to vector<1x1x16xf32>
    %46 = vector.broadcast %45 : vector<1x1x16xf32> to vector<4x1x16xf32>
    %47 = arith.mulf %46, %44 : vector<4x1x16xf32>
    %c0_22 = arith.constant 0 : index
    %c0_23 = arith.constant 0 : index
    %48 = vector.load %arg7[%c0_22, %c0_23] : memref<1x16xf32, #tpu.memory_space<vmem>>, vector<1x16xf32>
    %49 = arith.mulf %21, %47 : vector<4x1x16xf32>
    %50 = vector.shape_cast %48 : vector<1x16xf32> to vector<1x1x16xf32>
    %51 = vector.broadcast %50 : vector<1x1x16xf32> to vector<4x1x16xf32>
    %52 = arith.subf %51, %49 : vector<4x1x16xf32>
    %53 = vector.broadcast %35 : vector<4x1x16xf32> to vector<4x8x16xf32>
    %54 = arith.mulf %5, %53 : vector<4x8x16xf32>
    %55 = vector.broadcast %40 : vector<4x1x16xf32> to vector<4x8x16xf32>
    %56 = arith.addf %54, %55 : vector<4x8x16xf32>
    %57 = vector.broadcast %47 : vector<4x1x16xf32> to vector<4x8x16xf32>
    %58 = arith.mulf %6, %57 : vector<4x8x16xf32>
    %59 = vector.broadcast %52 : vector<4x1x16xf32> to vector<4x8x16xf32>
    %60 = arith.addf %58, %59 : vector<4x8x16xf32>
    %61 = arith.negf %60 : vector<4x8x16xf32>
    %62 = math.exp %61 : vector<4x8x16xf32>
    %cst_24 = arith.constant 1.000000e+00 : f32
    %63 = vector.broadcast %cst_24 : f32 to vector<4x8x16xf32>
    %64 = arith.addf %63, %62 : vector<4x8x16xf32>
    %65 = arith.divf %63, %64 : vector<4x8x16xf32>
    %66 = arith.mulf %56, %65 : vector<4x8x16xf32>
    %67 = vector.shape_cast %66 : vector<4x8x16xf32> to vector<32x16xf32>
    %c0_25 = arith.constant 0 : index
    %c0_26 = arith.constant 0 : index
    %68 = vector.load %arg8[%c0_25, %c0_26] : memref<16x16xf32, #tpu.memory_space<vmem>>, vector<16x16xf32>
    %cst_27 = arith.constant dense<0.000000e+00> : vector<32x16xf32>
    %69 = tpu.matmul %67, %68, %cst_27 {dimension_numbers = #tpu.dot_dimension_numbers<[1], [0], [0], [1], [0, 0, 1, 1], [], []>} : vector<32x16xf32>, vector<16x16xf32>, vector<32x16xf32> -> vector<32x16xf32>
    %c0_28 = arith.constant 0 : index
    %c0_29 = arith.constant 0 : index
    %70 = vector.load %arg9[%c0_28, %c0_29] : memref<16x16xf32, #tpu.memory_space<vmem>>, vector<16x16xf32>
    %cst_30 = arith.constant dense<0.000000e+00> : vector<32x16xf32>
    %71 = tpu.matmul %67, %70, %cst_30 {dimension_numbers = #tpu.dot_dimension_numbers<[1], [0], [0], [1], [0, 0, 1, 1], [], []>} : vector<32x16xf32>, vector<16x16xf32>, vector<32x16xf32> -> vector<32x16xf32>
    %72 = vector.shape_cast %69 : vector<32x16xf32> to vector<4x8x16xf32>
    %73 = vector.shape_cast %71 : vector<32x16xf32> to vector<4x8x16xf32>
    %cst_31 = arith.constant dense<0.000000e+00> : vector<4x16xf32>
    %74 = vector.multi_reduction <add>, %72, %cst_31 [1] : vector<4x8x16xf32> to vector<4x16xf32>
    %75 = vector.shape_cast %74 : vector<4x16xf32> to vector<4x1x16xf32>
    %cst_32 = arith.constant 1.250000e-01 : f32
    %76 = vector.broadcast %cst_32 : f32 to vector<4x1x16xf32>
    %77 = arith.mulf %75, %76 : vector<4x1x16xf32>
    %78 = vector.broadcast %77 : vector<4x1x16xf32> to vector<4x8x16xf32>
    %79 = arith.subf %72, %78 : vector<4x8x16xf32>
    %80 = arith.mulf %79, %79 : vector<4x8x16xf32>
    %cst_33 = arith.constant dense<0.000000e+00> : vector<4x16xf32>
    %81 = vector.multi_reduction <add>, %80, %cst_33 [1] : vector<4x8x16xf32> to vector<4x16xf32>
    %82 = vector.shape_cast %81 : vector<4x16xf32> to vector<4x1x16xf32>
    %cst_34 = arith.constant 1.250000e-01 : f32
    %83 = vector.broadcast %cst_34 : f32 to vector<4x1x16xf32>
    %84 = arith.mulf %82, %83 : vector<4x1x16xf32>
    %cst_35 = arith.constant dense<0.000000e+00> : vector<4x16xf32>
    %85 = vector.multi_reduction <add>, %73, %cst_35 [1] : vector<4x8x16xf32> to vector<4x16xf32>
    %86 = vector.shape_cast %85 : vector<4x16xf32> to vector<4x1x16xf32>
    %cst_36 = arith.constant 1.250000e-01 : f32
    %87 = vector.broadcast %cst_36 : f32 to vector<4x1x16xf32>
    %88 = arith.mulf %86, %87 : vector<4x1x16xf32>
    %89 = vector.broadcast %88 : vector<4x1x16xf32> to vector<4x8x16xf32>
    %90 = arith.subf %73, %89 : vector<4x8x16xf32>
    %91 = arith.mulf %90, %90 : vector<4x8x16xf32>
    %cst_37 = arith.constant dense<0.000000e+00> : vector<4x16xf32>
    %92 = vector.multi_reduction <add>, %91, %cst_37 [1] : vector<4x8x16xf32> to vector<4x16xf32>
    %93 = vector.shape_cast %92 : vector<4x16xf32> to vector<4x1x16xf32>
    %cst_38 = arith.constant 1.250000e-01 : f32
    %94 = vector.broadcast %cst_38 : f32 to vector<4x1x16xf32>
    %95 = arith.mulf %93, %94 : vector<4x1x16xf32>
    %c0_39 = arith.constant 0 : index
    %c0_40 = arith.constant 0 : index
    %96 = vector.load %arg10[%c0_39, %c0_40] : memref<1x16xf32, #tpu.memory_space<vmem>>, vector<1x16xf32>
    %cst_41 = arith.constant 9.99999974E-6 : f32
    %97 = vector.broadcast %cst_41 : f32 to vector<4x1x16xf32>
    %98 = arith.addf %84, %97 : vector<4x1x16xf32>
    %99 = math.rsqrt %98 : vector<4x1x16xf32>
    %100 = vector.shape_cast %96 : vector<1x16xf32> to vector<1x1x16xf32>
    %101 = vector.broadcast %100 : vector<1x1x16xf32> to vector<4x1x16xf32>
    %102 = arith.mulf %101, %99 : vector<4x1x16xf32>
    %c0_42 = arith.constant 0 : index
    %c0_43 = arith.constant 0 : index
    %103 = vector.load %arg12[%c0_42, %c0_43] : memref<1x16xf32, #tpu.memory_space<vmem>>, vector<1x16xf32>
    %104 = arith.mulf %77, %102 : vector<4x1x16xf32>
    %105 = vector.shape_cast %103 : vector<1x16xf32> to vector<1x1x16xf32>
    %106 = vector.broadcast %105 : vector<1x1x16xf32> to vector<4x1x16xf32>
    %107 = arith.subf %106, %104 : vector<4x1x16xf32>
    %c0_44 = arith.constant 0 : index
    %c0_45 = arith.constant 0 : index
    %108 = vector.load %arg11[%c0_44, %c0_45] : memref<1x16xf32, #tpu.memory_space<vmem>>, vector<1x16xf32>
    %cst_46 = arith.constant 9.99999974E-6 : f32
    %109 = vector.broadcast %cst_46 : f32 to vector<4x1x16xf32>
    %110 = arith.addf %95, %109 : vector<4x1x16xf32>
    %111 = math.rsqrt %110 : vector<4x1x16xf32>
    %112 = vector.shape_cast %108 : vector<1x16xf32> to vector<1x1x16xf32>
    %113 = vector.broadcast %112 : vector<1x1x16xf32> to vector<4x1x16xf32>
    %114 = arith.mulf %113, %111 : vector<4x1x16xf32>
    %c0_47 = arith.constant 0 : index
    %c0_48 = arith.constant 0 : index
    %115 = vector.load %arg13[%c0_47, %c0_48] : memref<1x16xf32, #tpu.memory_space<vmem>>, vector<1x16xf32>
    %116 = arith.mulf %88, %114 : vector<4x1x16xf32>
    %117 = vector.shape_cast %115 : vector<1x16xf32> to vector<1x1x16xf32>
    %118 = vector.broadcast %117 : vector<1x1x16xf32> to vector<4x1x16xf32>
    %119 = arith.subf %118, %116 : vector<4x1x16xf32>
    %120 = vector.broadcast %102 : vector<4x1x16xf32> to vector<4x8x16xf32>
    %121 = arith.mulf %72, %120 : vector<4x8x16xf32>
    %122 = vector.broadcast %107 : vector<4x1x16xf32> to vector<4x8x16xf32>
    %123 = arith.addf %121, %122 : vector<4x8x16xf32>
    %124 = vector.broadcast %114 : vector<4x1x16xf32> to vector<4x8x16xf32>
    %125 = arith.mulf %73, %124 : vector<4x8x16xf32>
    %126 = vector.broadcast %119 : vector<4x1x16xf32> to vector<4x8x16xf32>
    %127 = arith.addf %125, %126 : vector<4x8x16xf32>
    %128 = arith.negf %127 : vector<4x8x16xf32>
    %129 = math.exp %128 : vector<4x8x16xf32>
    %cst_49 = arith.constant 1.000000e+00 : f32
    %130 = vector.broadcast %cst_49 : f32 to vector<4x8x16xf32>
    %131 = arith.addf %130, %129 : vector<4x8x16xf32>
    %132 = arith.divf %130, %131 : vector<4x8x16xf32>
    %133 = arith.mulf %123, %132 : vector<4x8x16xf32>
    %134 = vector.shape_cast %133 : vector<4x8x16xf32> to vector<32x16xf32>
    %135 = arith.addf %67, %134 : vector<32x16xf32>
    %cst_50 = arith.constant 0.707106769 : f32
    %136 = vector.broadcast %cst_50 : f32 to vector<32x16xf32>
    %137 = arith.mulf %135, %136 : vector<32x16xf32>
    %c0_51 = arith.constant 0 : index
    %c0_52 = arith.constant 0 : index
    %138 = vector.load %arg14[%c0_51, %c0_52] : memref<32x16xf32, #tpu.memory_space<vmem>>, vector<32x16xf32>
    tpu.vector_store %arg14[%c0_51, %c0_52], %137 {strides = array<i32>} : memref<32x16xf32, #tpu.memory_space<vmem>>, vector<32x16xf32>,
    return
  }
  func.func @transform_0(%arg0: i32) -> (i32, i32) {
    %c0_i32 = arith.constant 0 : i32
    %c0_i32_0 = arith.constant 0 : i32
    return %arg0, %c0_i32 : i32, i32
  }
  func.func @transform_1(%arg0: i32) -> (i32, i32) {
    %c0_i32 = arith.constant 0 : i32
    %c0_i32_0 = arith.constant 0 : i32
    %c0_i32_1 = arith.constant 0 : i32
    return %c0_i32, %c0_i32_0 : i32, i32
  }
  func.func @transform_2(%arg0: i32) -> (i32, i32) {
    %c0_i32 = arith.constant 0 : i32
    %c0_i32_0 = arith.constant 0 : i32
    %c0_i32_1 = arith.constant 0 : i32
    return %c0_i32, %c0_i32_0 : i32, i32
  }
  func.func @transform_3(%arg0: i32) -> (i32, i32) {
    %c0_i32 = arith.constant 0 : i32
    %c0_i32_0 = arith.constant 0 : i32
    %c0_i32_1 = arith.constant 0 : i32
    return %c0_i32, %c0_i32_0 : i32, i32
  }
  func.func @transform_4(%arg0: i32) -> (i32, i32) {
    %c0_i32 = arith.constant 0 : i32
    %c0_i32_0 = arith.constant 0 : i32
    %c0_i32_1 = arith.constant 0 : i32
    return %c0_i32, %c0_i32_0 : i32, i32
  }
  func.func @transform_5(%arg0: i32) -> (i32, i32) {
    %c0_i32 = arith.constant 0 : i32
    %c0_i32_0 = arith.constant 0 : i32
    %c0_i32_1 = arith.constant 0 : i32
    return %c0_i32, %c0_i32_0 : i32, i32
  }
  func.func @transform_6(%arg0: i32) -> (i32, i32) {
    %c0_i32 = arith.constant 0 : i32
    %c0_i32_0 = arith.constant 0 : i32
    %c0_i32_1 = arith.constant 0 : i32
    return %c0_i32, %c0_i32_0 : i32, i32
  }
  func.func @transform_7(%arg0: i32) -> (i32, i32) {
    %c0_i32 = arith.constant 0 : i32
    %c0_i32_0 = arith.constant 0 : i32
    %c0_i32_1 = arith.constant 0 : i32
    return %c0_i32, %c0_i32_0 : i32, i32
  }
  func.func @transform_8(%arg0: i32) -> (i32, i32) {
    %c0_i32 = arith.constant 0 : i32
    %c0_i32_0 = arith.constant 0 : i32
    %c0_i32_1 = arith.constant 0 : i32
    return %c0_i32, %c0_i32_0 : i32, i32
  }
  func.func @transform_9(%arg0: i32) -> (i32, i32) {
    %c0_i32 = arith.constant 0 : i32
    %c0_i32_0 = arith.constant 0 : i32
    %c0_i32_1 = arith.constant 0 : i32
    return %c0_i32, %c0_i32_0 : i32, i32
  }
  func.func @transform_10(%arg0: i32) -> (i32, i32) {
    %c0_i32 = arith.constant 0 : i32
    %c0_i32_0 = arith.constant 0 : i32
    %c0_i32_1 = arith.constant 0 : i32
    return %c0_i32, %c0_i32_0 : i32, i32
  }
  func.func @transform_11(%arg0: i32) -> (i32, i32) {
    %c0_i32 = arith.constant 0 : i32
    %c0_i32_0 = arith.constant 0 : i32
    %c0_i32_1 = arith.constant 0 : i32
    return %c0_i32, %c0_i32_0 : i32, i32
  }
  func.func @transform_12(%arg0: i32) -> (i32, i32) {
    %c0_i32 = arith.constant 0 : i32
    %c0_i32_0 = arith.constant 0 : i32
    %c0_i32_1 = arith.constant 0 : i32
    return %c0_i32, %c0_i32_0 : i32, i32
  }
  func.func @transform_13(%arg0: i32) -> (i32, i32) {
    %c0_i32 = arith.constant 0 : i32
    %c0_i32_0 = arith.constant 0 : i32
    return %arg0, %c0_i32 : i32, i32
  }
}

</mosaic_0001>

<llo_original>
// kernel: tpu_custom_call.1
$region0: #{tpu_custom_call.1}
  #allocation0 [shape = 'u32[]', space=smem, size = 0x4, offset = 0x4, fixed_abs, tag = 'smem constant byte address 0x4 - core index']
  #allocation1 [shape = 'u32[144,128]{1,0:T(1,128)}', space=vmem, size = 0x12000, scoped, tag = 'internal scratch']
  %s0 = inlined_call_operand.vmem [shape: f32[64,16], index: 0, kind: input, shape index: {}]
  %s1 = inlined_call_operand.vmem [shape: f32[16,16], index: 1, kind: input, shape index: {}]
  %s2 = inlined_call_operand.vmem [shape: f32[16,16], index: 2, kind: input, shape index: {}]
  %s3 = inlined_call_operand.vmem [shape: f32[1,16], index: 3, kind: input, shape index: {}]
  %s4 = inlined_call_operand.vmem [shape: f32[1,16], index: 4, kind: input, shape index: {}]
  %s5 = inlined_call_operand.vmem [shape: f32[1,16], index: 5, kind: input, shape index: {}]
  %s6 = inlined_call_operand.vmem [shape: f32[1,16], index: 6, kind: input, shape index: {}]
  %s7 = inlined_call_operand.vmem [shape: f32[16,16], index: 7, kind: input, shape index: {}]
  %s8 = inlined_call_operand.vmem [shape: f32[16,16], index: 8, kind: input, shape index: {}]
  %s9 = inlined_call_operand.vmem [shape: f32[1,16], index: 9, kind: input, shape index: {}]
  %s10 = inlined_call_operand.vmem [shape: f32[1,16], index: 10, kind: input, shape index: {}]
  %s11 = inlined_call_operand.vmem [shape: f32[1,16], index: 11, kind: input, shape index: {}]
  %s12 = inlined_call_operand.vmem [shape: f32[1,16], index: 12, kind: input, shape index: {}]
  %s13 = inlined_call_operand.vmem [shape: f32[64,16], index: 13, kind: output, shape index: {}]
  %s14 = sld [smem:[#allocation0]]
  $region85: #{tpu_custom_call.1} parent=0
    _
  %s16 = ssub.s32 1, %s14
  %s17 = scalar_select 0, %s16, %s14
  loop: start=0, step=1, limit=4
  $region2: #{tpu_custom_call.1} parent=0 // loop_pre_header
    _
  $region3: #{tpu_custom_call.1} parent=0 // loop_header
    %s19 = sphi 0, %s23
    %p20 = scmp.ge.s32.totalorder %s19, 4
    %s29 = sphi 0, %s31
    %s32 = sphi 0, %s29
    %s33 = sphi 0, %s32
    %s49 = sphi 0, %s33
    %s53 = sphi 0, %s53
    %s55 = sphi 0, %s53
    %s56 = sphi 0, %s55
    %s70 = sphi 0, %s56
    %s74 = sphi 0, %s74
    %s76 = sphi 0, %s74
    %s77 = sphi 0, %s76
    %s91 = sphi 0, %s77
    %s95 = sphi 0, %s95
    %s97 = sphi 0, %s95
    %s98 = sphi 0, %s97
    %s112 = sphi 0, %s98
    %s116 = sphi 0, %s116
    %s118 = sphi 0, %s116
    %s119 = sphi 0, %s118
    %s133 = sphi 0, %s119
    %s137 = sphi 0, %s137
    %s139 = sphi 0, %s137
    %s140 = sphi 0, %s139
    %s154 = sphi 0, %s140
    %s158 = sphi 0, %s158
    %s160 = sphi 0, %s158
    %s161 = sphi 0, %s160
    %s175 = sphi 0, %s161
    %s179 = sphi 0, %s179
    %s181 = sphi 0, %s179
    %s182 = sphi 0, %s181
    %s196 = sphi 0, %s182
    %s200 = sphi 0, %s200
    %s202 = sphi 0, %s200
    %s203 = sphi 0, %s202
    %s217 = sphi 0, %s203
    %s221 = sphi 0, %s221
    %s223 = sphi 0, %s221
    %s224 = sphi 0, %s223
    %s238 = sphi 0, %s224
    %s242 = sphi 0, %s242
    %s244 = sphi 0, %s242
    %s245 = sphi 0, %s244
    %s259 = sphi 0, %s245
    %s263 = sphi 0, %s263
    %s265 = sphi 0, %s263
    %s266 = sphi 0, %s265
    %s280 = sphi 0, %s266
    %s284 = sphi 0, %s284
    %s286 = sphi 0, %s284
    %s287 = sphi 0, %s286
    %s301 = sphi 0, %s287
    %s307 = sphi 0, %s309
    %s310 = sphi 0, %s307
    %s311 = sphi 0, %s310
    %s327 = sphi 0, %s311
  $region4: #{tpu_custom_call.1} parent=0 // loop_header_branch
    %22 = sbr.rel (%p20) target = $region8
  $region5: #{tpu_custom_call.1} parent=0 // loop_body
    %s24 = ssub.s32 %s19, 1
    %s25 = ssub.s32 %s19, 2
    %s26 = sadd.s32 %s19, 1
    %s27 = ssub.s32 %s19, %s26
    %p28 = scmp.eq.s32.totalorder %s27, 0
    %s30 = sadd.s32 %s29, 1
    %s31 = scalar_select %p28, %s29, %s30
    %p34 = pneg %p28
    %p35 = scmp.eq.s32.totalorder %s19, 1
    %p36 = por %p34, %p35
    %p37 = scmp.ne.s32.totalorder %s29, %s32
    %p38 = scmp.eq.s32.totalorder %s19, 0
    %p39 = por %p37, %p38
    %p40 = scmp.ne.s32.totalorder %s29, %s32
    %p41 = scmp.eq.s32.totalorder %s24, 1
    %p42 = por %p40, %p41
    %p43 = scmp.ne.s32.totalorder %s32, %s33
    %p44 = scmp.eq.s32.totalorder %s24, 0
    %p45 = por %p43, %p44
    %p46 = scmp.ne.s32.totalorder %s32, %s33
    %p47 = scmp.eq.s32.totalorder %s25, 1
    %p48 = por %p46, %p47
    %p50 = scmp.ne.s32.totalorder %s33, %s49
    %p51 = scmp.eq.s32.totalorder %s25, 0
    %p52 = por %p50, %p51
    %s54 = sadd.s32 %s53, 1
    %p57 = scmp.eq.s32.totalorder %s19, 1
    %p58 = scmp.ne.s32.totalorder %s53, %s55
    %p59 = scmp.eq.s32.totalorder %s19, 0
    %p60 = por %p58, %p59
    %p61 = scmp.ne.s32.totalorder %s53, %s55
    %p62 = scmp.eq.s32.totalorder %s24, 1
    %p63 = por %p61, %p62
    %p64 = scmp.ne.s32.totalorder %s55, %s56
    %p65 = scmp.eq.s32.totalorder %s24, 0
    %p66 = por %p64, %p65
    %p67 = scmp.ne.s32.totalorder %s55, %s56
    %p68 = scmp.eq.s32.totalorder %s25, 1
    %p69 = por %p67, %p68
    %p71 = scmp.ne.s32.totalorder %s56, %s70
    %p72 = scmp.eq.s32.totalorder %s25, 0
    %p73 = por %p71, %p72
    %s75 = sadd.s32 %s74, 1
    %p78 = scmp.eq.s32.totalorder %s19, 1
    %p79 = scmp.ne.s32.totalorder %s74, %s76
    %p80 = scmp.eq.s32.totalorder %s19, 0
    %p81 = por %p79, %p80
    %p82 = scmp.ne.s32.totalorder %s74, %s76
    %p83 = scmp.eq.s32.totalorder %s24, 1
    %p84 = por %p82, %p83
    %p85 = scmp.ne.s32.totalorder %s76, %s77
    %p86 = scmp.eq.s32.totalorder %s24, 0
    %p87 = por %p85, %p86
    %p88 = scmp.ne.s32.totalorder %s76, %s77
    %p89 = scmp.eq.s32.totalorder %s25, 1
    %p90 = por %p88, %p89
    %p92 = scmp.ne.s32.totalorder %s77, %s91
    %p93 = scmp.eq.s32.totalorder %s25, 0
    %p94 = por %p92, %p93
    %s96 = sadd.s32 %s95, 1
    %p99 = scmp.eq.s32.totalorder %s19, 1
    %p100 = scmp.ne.s32.totalorder %s95, %s97
    %p101 = scmp.eq.s32.totalorder %s19, 0
    %p102 = por %p100, %p101
    %p103 = scmp.ne.s32.totalorder %s95, %s97
    %p104 = scmp.eq.s32.totalorder %s24, 1
    %p105 = por %p103, %p104
    %p106 = scmp.ne.s32.totalorder %s97, %s98
    %p107 = scmp.eq.s32.totalorder %s24, 0
    %p108 = por %p106, %p107
    %p109 = scmp.ne.s32.totalorder %s97, %s98
    %p110 = scmp.eq.s32.totalorder %s25, 1
    %p111 = por %p109, %p110
    %p113 = scmp.ne.s32.totalorder %s98, %s112
    %p114 = scmp.eq.s32.totalorder %s25, 0
    %p115 = por %p113, %p114
    %s117 = sadd.s32 %s116, 1
    %p120 = scmp.eq.s32.totalorder %s19, 1
    %p121 = scmp.ne.s32.totalorder %s116, %s118
    %p122 = scmp.eq.s32.totalorder %s19, 0
    %p123 = por %p121, %p122
    %p124 = scmp.ne.s32.totalorder %s116, %s118
    %p125 = scmp.eq.s32.totalorder %s24, 1
    %p126 = por %p124, %p125
    %p127 = scmp.ne.s32.totalorder %s118, %s119
    %p128 = scmp.eq.s32.totalorder %s24, 0
    %p129 = por %p127, %p128
    %p130 = scmp.ne.s32.totalorder %s118, %s119
    %p131 = scmp.eq.s32.totalorder %s25, 1
    %p132 = por %p130, %p131
    %p134 = scmp.ne.s32.totalorder %s119, %s133
    %p135 = scmp.eq.s32.totalorder %s25, 0
    %p136 = por %p134, %p135
    %s138 = sadd.s32 %s137, 1
    %p141 = scmp.eq.s32.totalorder %s19, 1
    %p142 = scmp.ne.s32.totalorder %s137, %s139
    %p143 = scmp.eq.s32.totalorder %s19, 0
    %p144 = por %p142, %p143
    %p145 = scmp.ne.s32.totalorder %s137, %s139
    %p146 = scmp.eq.s32.totalorder %s24, 1
    %p147 = por %p145, %p146
    %p148 = scmp.ne.s32.totalorder %s139, %s140
    %p149 = scmp.eq.s32.totalorder %s24, 0
    %p150 = por %p148, %p149
    %p151 = scmp.ne.s32.totalorder %s139, %s140
    %p152 = scmp.eq.s32.totalorder %s25, 1
    %p153 = por %p151, %p152
    %p155 = scmp.ne.s32.totalorder %s140, %s154
    %p156 = scmp.eq.s32.totalorder %s25, 0
    %p157 = por %p155, %p156
    %s159 = sadd.s32 %s158, 1
    %p162 = scmp.eq.s32.totalorder %s19, 1
    %p163 = scmp.ne.s32.totalorder %s158, %s160
    %p164 = scmp.eq.s32.totalorder %s19, 0
    %p165 = por %p163, %p164
    %p166 = scmp.ne.s32.totalorder %s158, %s160
    %p167 = scmp.eq.s32.totalorder %s24, 1
    %p168 = por %p166, %p167
    %p169 = scmp.ne.s32.totalorder %s160, %s161
    %p170 = scmp.eq.s32.totalorder %s24, 0
    %p171 = por %p169, %p170
    %p172 = scmp.ne.s32.totalorder %s160, %s161
    %p173 = scmp.eq.s32.totalorder %s25, 1
    %p174 = por %p172, %p173
    %p176 = scmp.ne.s32.totalorder %s161, %s175
    %p177 = scmp.eq.s32.totalorder %s25, 0
    %p178 = por %p176, %p177
    %s180 = sadd.s32 %s179, 1
    %p183 = scmp.eq.s32.totalorder %s19, 1
    %p184 = scmp.ne.s32.totalorder %s179, %s181
    %p185 = scmp.eq.s32.totalorder %s19, 0
    %p186 = por %p184, %p185
    %p187 = scmp.ne.s32.totalorder %s179, %s181
    %p188 = scmp.eq.s32.totalorder %s24, 1
    %p189 = por %p187, %p188
    %p190 = scmp.ne.s32.totalorder %s181, %s182
    %p191 = scmp.eq.s32.totalorder %s24, 0
    %p192 = por %p190, %p191
    %p193 = scmp.ne.s32.totalorder %s181, %s182
    %p194 = scmp.eq.s32.totalorder %s25, 1
    %p195 = por %p193, %p194
    %p197 = scmp.ne.s32.totalorder %s182, %s196
    %p198 = scmp.eq.s32.totalorder %s25, 0
    %p199 = por %p197, %p198
    %s201 = sadd.s32 %s200, 1
    %p204 = scmp.eq.s32.totalorder %s19, 1
    %p205 = scmp.ne.s32.totalorder %s200, %s202
    %p206 = scmp.eq.s32.totalorder %s19, 0
    %p207 = por %p205, %p206
    %p208 = scmp.ne.s32.totalorder %s200, %s202
    %p209 = scmp.eq.s32.totalorder %s24, 1
    %p210 = por %p208, %p209
    %p211 = scmp.ne.s32.totalorder %s202, %s203
    %p212 = scmp.eq.s32.totalorder %s24, 0
    %p213 = por %p211, %p212
    %p214 = scmp.ne.s32.totalorder %s202, %s203
    %p215 = scmp.eq.s32.totalorder %s25, 1
    %p216 = por %p214, %p215
    %p218 = scmp.ne.s32.totalorder %s203, %s217
    %p219 = scmp.eq.s32.totalorder %s25, 0
    %p220 = por %p218, %p219
    %s222 = sadd.s32 %s221, 1
    %p225 = scmp.eq.s32.totalorder %s19, 1
    %p226 = scmp.ne.s32.totalorder %s221, %s223
    %p227 = scmp.eq.s32.totalorder %s19, 0
    %p228 = por %p226, %p227
    %p229 = scmp.ne.s32.totalorder %s221, %s223
    %p230 = scmp.eq.s32.totalorder %s24, 1
    %p231 = por %p229, %p230
    %p232 = scmp.ne.s32.totalorder %s223, %s224
    %p233 = scmp.eq.s32.totalorder %s24, 0
    %p234 = por %p232, %p233
    %p235 = scmp.ne.s32.totalorder %s223, %s224
    %p236 = scmp.eq.s32.totalorder %s25, 1
    %p237 = por %p235, %p236
    %p239 = scmp.ne.s32.totalorder %s224, %s238
    %p240 = scmp.eq.s32.totalorder %s25, 0
    %p241 = por %p239, %p240
    %s243 = sadd.s32 %s242, 1
    %p246 = scmp.eq.s32.totalorder %s19, 1
    %p247 = scmp.ne.s32.totalorder %s242, %s244
    %p248 = scmp.eq.s32.totalorder %s19, 0
    %p249 = por %p247, %p248
    %p250 = scmp.ne.s32.totalorder %s242, %s244
    %p251 = scmp.eq.s32.totalorder %s24, 1
    %p252 = por %p250, %p251
    %p253 = scmp.ne.s32.totalorder %s244, %s245
    %p254 = scmp.eq.s32.totalorder %s24, 0
    %p255 = por %p253, %p254
    %p256 = scmp.ne.s32.totalorder %s244, %s245
    %p257 = scmp.eq.s32.totalorder %s25, 1
    %p258 = por %p256, %p257
    %p260 = scmp.ne.s32.totalorder %s245, %s259
    %p261 = scmp.eq.s32.totalorder %s25, 0
    %p262 = por %p260, %p261
    %s264 = sadd.s32 %s263, 1
    %p267 = scmp.eq.s32.totalorder %s19, 1
    %p268 = scmp.ne.s32.totalorder %s263, %s265
    %p269 = scmp.eq.s32.totalorder %s19, 0
    %p270 = por %p268, %p269
    %p271 = scmp.ne.s32.totalorder %s263, %s265
    %p272 = scmp.eq.s32.totalorder %s24, 1
    %p273 = por %p271, %p272
    %p274 = scmp.ne.s32.totalorder %s265, %s266
    %p275 = scmp.eq.s32.totalorder %s24, 0
    %p276 = por %p274, %p275
    %p277 = scmp.ne.s32.totalorder %s265, %s266
    %p278 = scmp.eq.s32.totalorder %s25, 1
    %p279 = por %p277, %p278
    %p281 = scmp.ne.s32.totalorder %s266, %s280
    %p282 = scmp.eq.s32.totalorder %s25, 0
    %p283 = por %p281, %p282
    %s285 = sadd.s32 %s284, 1
    %p288 = scmp.eq.s32.totalorder %s19, 1
    %p289 = scmp.ne.s32.totalorder %s284, %s286
    %p290 = scmp.eq.s32.totalorder %s19, 0
    %p291 = por %p289, %p290
    %p292 = scmp.ne.s32.totalorder %s284, %s286
    %p293 = scmp.eq.s32.totalorder %s24, 1
    %p294 = por %p292, %p293
    %p295 = scmp.ne.s32.totalorder %s286, %s287
    %p296 = scmp.eq.s32.totalorder %s24, 0
    %p297 = por %p295, %p296
    %p298 = scmp.ne.s32.totalorder %s286, %s287
    %p299 = scmp.eq.s32.totalorder %s25, 1
    %p300 = por %p298, %p299
    %p302 = scmp.ne.s32.totalorder %s287, %s301
    %p303 = scmp.eq.s32.totalorder %s25, 0
    %p304 = por %p302, %p303
    %s305 = ssub.s32 %s19, %s26
    %p306 = scmp.eq.s32.totalorder %s305, 0
    %s308 = sadd.s32 %s307, 1
    %s309 = scalar_select %p306, %s307, %s308
    %p312 = pneg %p306
    %p313 = scmp.eq.s32.totalorder %s19, 1
    %p314 = por %p312, %p313
    %p315 = scmp.ne.s32.totalorder %s307, %s310
    %p316 = scmp.eq.s32.totalorder %s19, 0
    %p317 = por %p315, %p316
    %p318 = scmp.ne.s32.totalorder %s307, %s310
    %p319 = scmp.eq.s32.totalorder %s24, 1
    %p320 = por %p318, %p319
    %p321 = scmp.ne.s32.totalorder %s310, %s311
    %p322 = scmp.eq.s32.totalorder %s24, 0
    %p323 = por %p321, %p322
    %p324 = scmp.ne.s32.totalorder %s310, %s311
    %p325 = scmp.eq.s32.totalorder %s25, 1
    %p326 = por %p324, %p325
    %p328 = scmp.ne.s32.totalorder %s311, %s327
    %p329 = scmp.eq.s32.totalorder %s25, 0
    %p330 = por %p328, %p329
    %p331 = scmp.le.s32.totalorder 1, %s19
    %p332 = scmp.lt.s32.totalorder %s19, 3
    %p333 = pnand %p331, %p332
    %p334 = pneg %p333
    // Predicated region
    $region9: #{tpu_custom_call.1} parent=5 // pred_check
      _
    $region10: #{tpu_custom_call.1} parent=5 // pred_check_branch
      %336 = sbr.rel (%p333) target = $region12
    $region11: #{tpu_custom_call.1} parent=5 // pred_region
      %s337 = ssub.s32 %s19, 1
      // Predicated region
      $region13: #{tpu_custom_call.1} parent=11 // pred_check
        %p338 = pneg %p66
      $region14: #{tpu_custom_call.1} parent=11 // pred_check_branch
        %340 = sbr.rel (%p338) target = $region16
      $region15: #{tpu_custom_call.1} parent=11 // pred_region
        _
      $region16: #{tpu_custom_call.1} parent=11 // pred_fallthru
        _
      // Predicated region
      $region17: #{tpu_custom_call.1} parent=11 // pred_check
        %p341 = pneg %p87
      $region18: #{tpu_custom_call.1} parent=11 // pred_check_branch
        %343 = sbr.rel (%p341) target = $region20
      $region19: #{tpu_custom_call.1} parent=11 // pred_region
        _
      $region20: #{tpu_custom_call.1} parent=11 // pred_fallthru
        _
      // Predicated region
      $region21: #{tpu_custom_call.1} parent=11 // pred_check
        %p344 = pneg %p108
      $region22: #{tpu_custom_call.1} parent=11 // pred_check_branch
        %346 = sbr.rel (%p344) target = $region24
      $region23: #{tpu_custom_call.1} parent=11 // pred_region
        _
      $region24: #{tpu_custom_call.1} parent=11 // pred_fallthru
        _
      // Predicated region
      $region25: #{tpu_custom_call.1} parent=11 // pred_check
        %p347 = pneg %p129
      $region26: #{tpu_custom_call.1} parent=11 // pred_check_branch
        %349 = sbr.rel (%p347) target = $region28
      $region27: #{tpu_custom_call.1} parent=11 // pred_region
        _
      $region28: #{tpu_custom_call.1} parent=11 // pred_fallthru
        _
      // Predicated region
      $region29: #{tpu_custom_call.1} parent=11 // pred_check
        %p350 = pneg %p150
      $region30: #{tpu_custom_call.1} parent=11 // pred_check_branch
        %352 = sbr.rel (%p350) target = $region32
      $region31: #{tpu_custom_call.1} parent=11 // pred_region
        _
      $region32: #{tpu_custom_call.1} parent=11 // pred_fallthru
        _
      // Predicated region
      $region33: #{tpu_custom_call.1} parent=11 // pred_check
        %p353 = pneg %p171
      $region34: #{tpu_custom_call.1} parent=11 // pred_check_branch
        %355 = sbr.rel (%p353) target = $region36
      $region35: #{tpu_custom_call.1} parent=11 // pred_region
        _
      $region36: #{tpu_custom_call.1} parent=11 // pred_fallthru
        _
      // Predicated region
      $region37: #{tpu_custom_call.1} parent=11 // pred_check
        %p356 = pneg %p192
      $region38: #{tpu_custom_call.1} parent=11 // pred_check_branch
        %358 = sbr.rel (%p356) target = $region40
      $region39: #{tpu_custom_call.1} parent=11 // pred_region
        _
      $region40: #{tpu_custom_call.1} parent=11 // pred_fallthru
        _
      // Predicated region
      $region41: #{tpu_custom_call.1} parent=11 // pred_check
        %p359 = pneg %p213
      $region42: #{tpu_custom_call.1} parent=11 // pred_check_branch
        %361 = sbr.rel (%p359) target = $region44
      $region43: #{tpu_custom_call.1} parent=11 // pred_region
        _
      $region44: #{tpu_custom_call.1} parent=11 // pred_fallthru
        _
      // Predicated region
      $region45: #{tpu_custom_call.1} parent=11 // pred_check
        %p362 = pneg %p234
      $region46: #{tpu_custom_call.1} parent=11 // pred_check_branch
        %364 = sbr.rel (%p362) target = $region48
      $region47: #{tpu_custom_call.1} parent=11 // pred_region
        _
      $region48: #{tpu_custom_call.1} parent=11 // pred_fallthru
        _
      // Predicated region
      $region49: #{tpu_custom_call.1} parent=11 // pred_check
        %p365 = pneg %p255
      $region50: #{tpu_custom_call.1} parent=11 // pred_check_branch
        %367 = sbr.rel (%p365) target = $region52
      $region51: #{tpu_custom_call.1} parent=11 // pred_region
        _
      $region52: #{tpu_custom_call.1} parent=11 // pred_fallthru
        _
      // Predicated region
      $region53: #{tpu_custom_call.1} parent=11 // pred_check
        %p368 = pneg %p276
      $region54: #{tpu_custom_call.1} parent=11 // pred_check_branch
        %370 = sbr.rel (%p368) target = $region56
      $region55: #{tpu_custom_call.1} parent=11 // pred_region
        _
      $region56: #{tpu_custom_call.1} parent=11 // pred_fallthru
        _
      // Predicated region
      $region57: #{tpu_custom_call.1} parent=11 // pred_check
        %p371 = pneg %p297
      $region58: #{tpu_custom_call.1} parent=11 // pred_check_branch
        %373 = sbr.rel (%p371) target = $region60
      $region59: #{tpu_custom_call.1} parent=11 // pred_region
        _
      $region60: #{tpu_custom_call.1} parent=11 // pred_fallthru
        _
    $region12: #{tpu_custom_call.1} parent=5 // pred_fallthru
      _
    %p374 = scmp.lt.s32.totalorder %s19, 2
    // Predicated region
    $region61: #{tpu_custom_call.1} parent=5 // pred_check
      %p375 = pneg %p374
    $region62: #{tpu_custom_call.1} parent=5 // pred_check_branch
      %377 = sbr.rel (%p375) target = $region64
    $region63: #{tpu_custom_call.1} parent=5 // pred_region
      // Predicated region
      $region65: #{tpu_custom_call.1} parent=63 // pred_check
        %p378 = pneg %p39
      $region66: #{tpu_custom_call.1} parent=63 // pred_check_branch
        %380 = sbr.rel (%p378) target = $region68
      $region67: #{tpu_custom_call.1} parent=63 // pred_region
        %s381 = smul.u32 4, %s19
        %p382 = scmp.lt.s32.totalorder %s381, 7
        %s383 = scalar_select %p382, %s381, 7
        %s384 = smul.addr %s383, 8
        %s385 = scalar_lea.vmem %s0, %s384
        %s386 = smul.u32 4, %s19
      $region68: #{tpu_custom_call.1} parent=63 // pred_fallthru
        _
    $region64: #{tpu_custom_call.1} parent=5 // pred_fallthru
      _
    %p387 = scmp.le.s32.totalorder 1, %s19
    %p388 = scmp.lt.s32.totalorder %s19, 3
    %p389 = pnand %p387, %p388
    %p390 = pneg %p389
    // Predicated region
    $region69: #{tpu_custom_call.1} parent=5 // pred_check
      _
    $region70: #{tpu_custom_call.1} parent=5 // pred_check_branch
      %392 = sbr.rel (%p389) target = $region72
    $region71: #{tpu_custom_call.1} parent=5 // pred_region
      %s393 = ssub.s32 %s19, 1
      %s394 = smul.u32 4, %s24
      %p395 = scmp.lt.s32.totalorder %s394, 7
      %s396 = scalar_select %p395, %s394, 7
      %s397 = smul.addr %s396, 8
      %s398 = scalar_lea.vmem %s0, %s397
      %p399 = pneg %p45
      %p400 = pneg %p42
      %p401 = pneg %p66
      %p402 = pneg %p63
      %p403 = pneg %p87
      %p404 = pneg %p84
      %p405 = pneg %p108
      %p406 = pneg %p105
      %p407 = pneg %p129
      %p408 = pneg %p126
      %p409 = pneg %p150
      %p410 = pneg %p147
      %p411 = pneg %p171
      %p412 = pneg %p168
      %p413 = pneg %p192
      %p414 = pneg %p189
      %p415 = pneg %p213
      %p416 = pneg %p210
      %p417 = pneg %p234
      %p418 = pneg %p231
      %p419 = pneg %p255
      %p420 = pneg %p252
      %p421 = pneg %p276
      %p422 = pneg %p273
      %p423 = pneg %p297
      %p424 = pneg %p294
      %p425 = pneg %p323
      %p426 = pneg %p320
      %s427 = smul.u32 4, %s24
      %p428 = scmp.lt.s32.totalorder %s427, 7
      %s429 = scalar_select %p428, %s427, 7
      %s430 = smul.addr %s429, 8
      %s431 = scalar_lea.vmem %s13, %s430
      %s432 = smul.u32 4, %s24
      %p433 = scmp.lt.s32.totalorder %s432, 7
      %s434 = scalar_select %p433, %s432, 7
      %s435 = smul.addr %s434, 8
      %s436 = scalar_lea.vmem %s0, %s435
      %s437 = smul.u32 4, %s24
      %s438 = smul.u32 4, %s24
      %p439 = scmp.lt.s32.totalorder %s438, 7
      %s440 = scalar_select %p439, %s438, 7
      %s441 = smul.addr %s440, 8
      %s442 = scalar_lea.vmem %s13, %s441
      %s443 = smul.u32 4, %s24
      %v444 = vld [vmem:[%s436] sm:$0xff]
      %v445 = vld [vmem:[%s436 + $0x8] sm:$0xff]
      %v446 = vld [vmem:[%s436 + $0x10] sm:$0xff]
      %v447 = vld [vmem:[%s436 + $0x18] sm:$0xff]
      %v448 = vld [vmem:[%s1] sm:$0xff]
      %v449 = vld [vmem:[%s1 + $0x8] sm:$0xff]
      %vm450 = vcmask 130048
      %v452 = vsel %vm450, %v444, 0
      %v455 = vsel %vm450, %v445, 0
      %v458 = vsel %vm450, %v446, 0
      %v461 = vsel %vm450, %v447, 0
      %463 = vmatprep.subr.mxu0 0.0
      %464 = vmatpush1.msra.mxu0 %v448
      %465 = vmatprep.subr.mxu0 0.0
      %466 = vmatpush1.msra.mxu0 %v449
      %467 = vmatprep.subr.mxu0 0.0
      %468 = vmatpush1.msra.mxu0 0.0
      %469 = vmatprep.subr.mxu0 0.0
      %470 = vmatpush1.msra.mxu0 0.0
      %471 = vmatprep.subr.mxu0 0.0
      %472 = vmatpush1.msra.mxu0 0.0
      %473 = vmatprep.subr.mxu0 0.0
      %474 = vmatpush1.msra.mxu0 0.0
      %475 = vmatprep.subr.mxu0 0.0
      %476 = vmatpush1.msra.mxu0 0.0
      %477 = vmatprep.subr.mxu0 0.0
      %478 = vmatpush1.msra.mxu0 0.0
      %479 = vmatprep.subr.mxu0 0.0
      %480 = vmatpush1.msra.mxu0 0.0
      %481 = vmatprep.subr.mxu0 0.0
      %482 = vmatpush1.msra.mxu0 0.0
      %483 = vmatprep.subr.mxu0 0.0
      %484 = vmatpush1.msra.mxu0 0.0
      %485 = vmatprep.subr.mxu0 0.0
      %486 = vmatpush1.msra.mxu0 0.0
      %487 = vmatprep.subr.mxu0 0.0
      %488 = vmatpush1.msra.mxu0 0.0
      %489 = vmatprep.subr.mxu0 0.0
      %490 = vmatpush1.msra.mxu0 0.0
      %491 = vmatprep.subr.mxu0 0.0
      %492 = vmatpush1.msra.mxu0 0.0
      %493 = vmatprep.subr.mxu0 0.0
      %494 = vmatpush1.msra.mxu0 0.0
      %495 = vmatprep.subr.mxu0 0.0
      %496 = vmatpush1.msra.mxu0 0.0
      %497 = vmatprep.subr.mxu0 0.0
      %498 = vmatpush1.msra.mxu0 0.0
      %499 = vmatprep.subr.mxu0 0.0
      %500 = vmatpush1.msra.mxu0 0.0
      %501 = vmatprep.subr.mxu0 0.0
      %502 = vmatpush1.msra.mxu0 0.0
      %503 = vmatprep.subr.mxu0 0.0
      %504 = vmatpush1.msra.mxu0 0.0
      %505 = vmatprep.subr.mxu0 0.0
      %506 = vmatpush1.msra.mxu0 0.0
      %507 = vmatprep.subr.mxu0 0.0
      %508 = vmatpush1.msra.mxu0 0.0
      %509 = vmatprep.subr.mxu0 0.0
      %510 = vmatpush1.msra.mxu0 0.0
      %511 = vmatprep.subr.mxu0 0.0
      %512 = vmatpush1.msra.mxu0 0.0
      %513 = vmatprep.subr.mxu0 0.0
      %514 = vmatpush1.msra.mxu0 0.0
      %515 = vmatprep.subr.mxu0 0.0
      %516 = vmatpush1.msra.mxu0 0.0
      %517 = vmatprep.subr.mxu0 0.0
      %518 = vmatpush1.msra.mxu0 0.0
      %519 = vmatprep.subr.mxu0 0.0
      %520 = vmatpush1.msra.mxu0 0.0
      %521 = vmatprep.subr.mxu0 0.0
      %522 = vmatpush1.msra.mxu0 0.0
      %523 = vmatprep.subr.mxu0 0.0
      %524 = vmatpush1.msra.mxu0 0.0
      %525 = vmatprep.subr.mxu0 0.0
      %526 = vmatpush1.msra.mxu0 0.0
      %527 = vmatprep.mubr.f32.mxu0 0.0
      %528 = vmatmul.mubr.f32.gmra.mrb[0].mxu0 %v452
      %v529 = vpop.f32.mrb[0].mxu0
      %v530 = vadd.f32 0.0, %v529
      %v531 = vpop.f32.mrb[0].mxu0
      %532 = vmatprep.mubr.f32.mxu0 0.0
      %533 = vmatmul.mubr.f32.gmra.mrb[0].mxu0 %v455
      %v534 = vpop.f32.mrb[0].mxu0
      %v535 = vadd.f32 0.0, %v534
      %v536 = vpop.f32.mrb[0].mxu0
      %537 = vmatprep.mubr.f32.mxu0 0.0
      %538 = vmatmul.mubr.f32.gmra.mrb[0].mxu0 %v458
      %v539 = vpop.f32.mrb[0].mxu0
      %v540 = vadd.f32 0.0, %v539
      %v541 = vpop.f32.mrb[0].mxu0
      %542 = vmatprep.mubr.f32.mxu0 0.0
      %543 = vmatmul.mubr.f32.gmra.mrb[0].mxu0 %v461
      %v544 = vpop.f32.mrb[0].mxu0
      %v545 = vadd.f32 0.0, %v544
      %v546 = vpop.f32.mrb[0].mxu0
      %547 = vdwg.mxu0
      %v548 = vld [vmem:[%s2] sm:$0xff]
      %v549 = vld [vmem:[%s2 + $0x8] sm:$0xff]
      %550 = vmatprep.subr.mxu0 0.0
      %551 = vmatpush1.msra.mxu0 %v548
      %552 = vmatprep.subr.mxu0 0.0
      %553 = vmatpush1.msra.mxu0 %v549
      %554 = vmatprep.subr.mxu0 0.0
      %555 = vmatpush1.msra.mxu0 0.0
      %556 = vmatprep.subr.mxu0 0.0
      %557 = vmatpush1.msra.mxu0 0.0
      %558 = vmatprep.subr.mxu0 0.0
      %559 = vmatpush1.msra.mxu0 0.0
      %560 = vmatprep.subr.mxu0 0.0
      %561 = vmatpush1.msra.mxu0 0.0
      %562 = vmatprep.subr.mxu0 0.0
      %563 = vmatpush1.msra.mxu0 0.0
      %564 = vmatprep.subr.mxu0 0.0
      %565 = vmatpush1.msra.mxu0 0.0
      %566 = vmatprep.subr.mxu0 0.0
      %567 = vmatpush1.msra.mxu0 0.0
      %568 = vmatprep.subr.mxu0 0.0
      %569 = vmatpush1.msra.mxu0 0.0
      %570 = vmatprep.subr.mxu0 0.0
      %571 = vmatpush1.msra.mxu0 0.0
      %572 = vmatprep.subr.mxu0 0.0
      %573 = vmatpush1.msra.mxu0 0.0
      %574 = vmatprep.subr.mxu0 0.0
      %575 = vmatpush1.msra.mxu0 0.0
      %576 = vmatprep.subr.mxu0 0.0
      %577 = vmatpush1.msra.mxu0 0.0
      %578 = vmatprep.subr.mxu0 0.0
      %579 = vmatpush1.msra.mxu0 0.0
      %580 = vmatprep.subr.mxu0 0.0
      %581 = vmatpush1.msra.mxu0 0.0
      %582 = vmatprep.subr.mxu0 0.0
      %583 = vmatpush1.msra.mxu0 0.0
      %584 = vmatprep.subr.mxu0 0.0
      %585 = vmatpush1.msra.mxu0 0.0
      %586 = vmatprep.subr.mxu0 0.0
      %587 = vmatpush1.msra.mxu0 0.0
      %588 = vmatprep.subr.mxu0 0.0
      %589 = vmatpush1.msra.mxu0 0.0
      %590 = vmatprep.subr.mxu0 0.0
      %591 = vmatpush1.msra.mxu0 0.0
      %592 = vmatprep.subr.mxu0 0.0
      %593 = vmatpush1.msra.mxu0 0.0
      %594 = vmatprep.subr.mxu0 0.0
      %595 = vmatpush1.msra.mxu0 0.0
      %596 = vmatprep.subr.mxu0 0.0
      %597 = vmatpush1.msra.mxu0 0.0
      %598 = vmatprep.subr.mxu0 0.0
      %599 = vmatpush1.msra.mxu0 0.0
      %600 = vmatprep.subr.mxu0 0.0
      %601 = vmatpush1.msra.mxu0 0.0
      %602 = vmatprep.subr.mxu0 0.0
      %603 = vmatpush1.msra.mxu0 0.0
      %604 = vmatprep.subr.mxu0 0.0
      %605 = vmatpush1.msra.mxu0 0.0
      %606 = vmatprep.subr.mxu0 0.0
      %607 = vmatpush1.msra.mxu0 0.0
      %608 = vmatprep.subr.mxu0 0.0
      %609 = vmatpush1.msra.mxu0 0.0
      %610 = vmatprep.subr.mxu0 0.0
      %611 = vmatpush1.msra.mxu0 0.0
      %612 = vmatprep.subr.mxu0 0.0
      %613 = vmatpush1.msra.mxu0 0.0
      %614 = vmatprep.mubr.f32.mxu0 0.0
      %615 = vmatmul.mubr.f32.gmra.mrb[0].mxu0 %v452
      %v616 = vpop.f32.mrb[0].mxu0
      %v617 = vadd.f32 0.0, %v616
      %v618 = vpop.f32.mrb[0].mxu0
      %619 = vmatprep.mubr.f32.mxu0 0.0
      %620 = vmatmul.mubr.f32.gmra.mrb[0].mxu0 %v455
      %v621 = vpop.f32.mrb[0].mxu0
      %v622 = vadd.f32 0.0, %v621
      %v623 = vpop.f32.mrb[0].mxu0
      %624 = vmatprep.mubr.f32.mxu0 0.0
      %625 = vmatmul.mubr.f32.gmra.mrb[0].mxu0 %v458
      %v626 = vpop.f32.mrb[0].mxu0
      %v627 = vadd.f32 0.0, %v626
      %v628 = vpop.f32.mrb[0].mxu0
      %629 = vmatprep.mubr.f32.mxu0 0.0
      %630 = vmatmul.mubr.f32.gmra.mrb[0].mxu0 %v461
      %v631 = vpop.f32.mrb[0].mxu0
      %v632 = vadd.f32 0.0, %v631
      %v633 = vpop.f32.mrb[0].mxu0
      %634 = vdwg.mxu0
      %v635 = vsel %vm450, %v530, 0.0
      %v636 = vrot.slane %v635, 4
      %v637 = vadd.f32 %v635, %v636
      %v638 = vrot.slane %v637, 2
      %v639 = vadd.f32 %v637, %v638
      %v640 = vrot.slane %v639, 1
      %v641 = vadd.f32 %v639, %v640
      %v642 = vsel %vm450, %v535, 0.0
      %v643 = vrot.slane %v642, 4
      %v644 = vadd.f32 %v642, %v643
      %v645 = vrot.slane %v644, 2
      %v646 = vadd.f32 %v644, %v645
      %v647 = vrot.slane %v646, 1
      %v648 = vadd.f32 %v646, %v647
      %v649 = vsel %vm450, %v540, 0.0
      %v650 = vrot.slane %v649, 4
      %v651 = vadd.f32 %v649, %v650
      %v652 = vrot.slane %v651, 2
      %v653 = vadd.f32 %v651, %v652
      %v654 = vrot.slane %v653, 1
      %v655 = vadd.f32 %v653, %v654
      %v656 = vsel %vm450, %v545, 0.0
      %v657 = vrot.slane %v656, 4
      %v658 = vadd.f32 %v656, %v657
      %v659 = vrot.slane %v658, 2
      %v660 = vadd.f32 %v658, %v659
      %v661 = vrot.slane %v660, 1
      %v662 = vadd.f32 %v660, %v661
      %v663 = vmul.f32 %v641, 0.125
      %v664 = vmul.f32 %v648, 0.125
      %v665 = vmul.f32 %v655, 0.125
      %v666 = vmul.f32 %v662, 0.125
      %v667 = vsub.f32 %v530, %v663
      %v668 = vsub.f32 %v535, %v664
      %v669 = vsub.f32 %v540, %v665
      %v670 = vsub.f32 %v545, %v666
      %v671 = vmul.f32 %v667, %v667
      %v672 = vmul.f32 %v668, %v668
      %v673 = vmul.f32 %v669, %v669
      %v674 = vmul.f32 %v670, %v670
      %v675 = vsel %vm450, %v671, 0.0
      %v676 = vrot.slane %v675, 4
      %v677 = vadd.f32 %v675, %v676
      %v678 = vrot.slane %v677, 2
      %v679 = vadd.f32 %v677, %v678
      %v680 = vrot.slane %v679, 1
      %v681 = vadd.f32 %v679, %v680
      %v682 = vsel %vm450, %v672, 0.0
      %v683 = vrot.slane %v682, 4
      %v684 = vadd.f32 %v682, %v683
      %v685 = vrot.slane %v684, 2
      %v686 = vadd.f32 %v684, %v685
      %v687 = vrot.slane %v686, 1
      %v688 = vadd.f32 %v686, %v687
      %v689 = vsel %vm450, %v673, 0.0
      %v690 = vrot.slane %v689, 4
      %v691 = vadd.f32 %v689, %v690
      %v692 = vrot.slane %v691, 2
      %v693 = vadd.f32 %v691, %v692
      %v694 = vrot.slane %v693, 1
      %v695 = vadd.f32 %v693, %v694
      %v696 = vsel %vm450, %v674, 0.0
      %v697 = vrot.slane %v696, 4
      %v698 = vadd.f32 %v696, %v697
      %v699 = vrot.slane %v698, 2
      %v700 = vadd.f32 %v698, %v699
      %v701 = vrot.slane %v700, 1
      %v702 = vadd.f32 %v700, %v701
      %v703 = vmul.f32 %v681, 0.125
      %v704 = vmul.f32 %v688, 0.125
      %v705 = vmul.f32 %v695, 0.125
      %v706 = vmul.f32 %v702, 0.125
      %v707 = vsel %vm450, %v617, 0.0
      %v708 = vrot.slane %v707, 4
      %v709 = vadd.f32 %v707, %v708
      %v710 = vrot.slane %v709, 2
      %v711 = vadd.f32 %v709, %v710
      %v712 = vrot.slane %v711, 1
      %v713 = vadd.f32 %v711, %v712
      %v714 = vsel %vm450, %v622, 0.0
      %v715 = vrot.slane %v714, 4
      %v716 = vadd.f32 %v714, %v715
      %v717 = vrot.slane %v716, 2
      %v718 = vadd.f32 %v716, %v717
      %v719 = vrot.slane %v718, 1
      %v720 = vadd.f32 %v718, %v719
      %v721 = vsel %vm450, %v627, 0.0
      %v722 = vrot.slane %v721, 4
      %v723 = vadd.f32 %v721, %v722
      %v724 = vrot.slane %v723, 2
      %v725 = vadd.f32 %v723, %v724
      %v726 = vrot.slane %v725, 1
      %v727 = vadd.f32 %v725, %v726
      %v728 = vsel %vm450, %v632, 0.0
      %v729 = vrot.slane %v728, 4
      %v730 = vadd.f32 %v728, %v729
      %v731 = vrot.slane %v730, 2
      %v732 = vadd.f32 %v730, %v731
      %v733 = vrot.slane %v732, 1
      %v734 = vadd.f32 %v732, %v733
      %v735 = vmul.f32 %v713, 0.125
      %v736 = vmul.f32 %v720, 0.125
      %v737 = vmul.f32 %v727, 0.125
      %v738 = vmul.f32 %v734, 0.125
      %v739 = vsub.f32 %v617, %v735
      %v740 = vsub.f32 %v622, %v736
      %v741 = vsub.f32 %v627, %v737
      %v742 = vsub.f32 %v632, %v738
      %v743 = vmul.f32 %v739, %v739
      %v744 = vmul.f32 %v740, %v740
      %v745 = vmul.f32 %v741, %v741
      %v746 = vmul.f32 %v742, %v742
      %v747 = vsel %vm450, %v743, 0.0
      %v748 = vrot.slane %v747, 4
      %v749 = vadd.f32 %v747, %v748
      %v750 = vrot.slane %v749, 2
      %v751 = vadd.f32 %v749, %v750
      %v752 = vrot.slane %v751, 1
      %v753 = vadd.f32 %v751, %v752
      %v754 = vsel %vm450, %v744, 0.0
      %v755 = vrot.slane %v754, 4
      %v756 = vadd.f32 %v754, %v755
      %v757 = vrot.slane %v756, 2
      %v758 = vadd.f32 %v756, %v757
      %v759 = vrot.slane %v758, 1
      %v760 = vadd.f32 %v758, %v759
      %v761 = vsel %vm450, %v745, 0.0
      %v762 = vrot.slane %v761, 4
      %v763 = vadd.f32 %v761, %v762
      %v764 = vrot.slane %v763, 2
      %v765 = vadd.f32 %v763, %v764
      %v766 = vrot.slane %v765, 1
      %v767 = vadd.f32 %v765, %v766
      %v768 = vsel %vm450, %v746, 0.0
      %v769 = vrot.slane %v768, 4
      %v770 = vadd.f32 %v768, %v769
      %v771 = vrot.slane %v770, 2
      %v772 = vadd.f32 %v770, %v771
      %v773 = vrot.slane %v772, 1
      %v774 = vadd.f32 %v772, %v773
      %v775 = vmul.f32 %v753, 0.125
      %v776 = vmul.f32 %v760, 0.125
      %v777 = vmul.f32 %v767, 0.125
      %v778 = vmul.f32 %v774, 0.125
      %v779 = vld [vmem:[%s3] sm:$0x1]
      %v780 = vadd.f32 %v703, 1e-05
      %v781 = vadd.f32 %v704, 1e-05
      %v782 = vadd.f32 %v705, 1e-05
      %v783 = vadd.f32 %v706, 1e-05
      %v784 = vrsqrt.pop %v780
      %v785 = vrsqrt.pop %v781
      %v786 = vrsqrt.pop %v782
      %v787 = vrsqrt.pop %v783
      %v788 = vmul.f32 %v779, %v784
      %v789 = vmul.f32 %v779, %v785
      %v790 = vmul.f32 %v779, %v786
      %v791 = vmul.f32 %v779, %v787
      %v792 = vld [vmem:[%s5] sm:$0x1]
      %v793 = vmul.f32 %v663, %v788
      %v794 = vmul.f32 %v664, %v789
      %v795 = vmul.f32 %v665, %v790
      %v796 = vmul.f32 %v666, %v791
      %v797 = vsub.f32 %v792, %v793
      %v798 = vsub.f32 %v792, %v794
      %v799 = vsub.f32 %v792, %v795
      %v800 = vsub.f32 %v792, %v796
      %v801 = vld [vmem:[%s4] sm:$0x1]
      %v802 = vadd.f32 %v775, 1e-05
      %v803 = vadd.f32 %v776, 1e-05
      %v804 = vadd.f32 %v777, 1e-05
      %v805 = vadd.f32 %v778, 1e-05
      %v806 = vrsqrt.pop %v802
      %v807 = vrsqrt.pop %v803
      %v808 = vrsqrt.pop %v804
      %v809 = vrsqrt.pop %v805
      %v810 = vmul.f32 %v801, %v806
      %v811 = vmul.f32 %v801, %v807
      %v812 = vmul.f32 %v801, %v808
      %v813 = vmul.f32 %v801, %v809
      %v814 = vld [vmem:[%s6] sm:$0x1]
      %v815 = vmul.f32 %v735, %v810
      %v816 = vmul.f32 %v736, %v811
      %v817 = vmul.f32 %v737, %v812
      %v818 = vmul.f32 %v738, %v813
      %v819 = vsub.f32 %v814, %v815
      %v820 = vsub.f32 %v814, %v816
      %v821 = vsub.f32 %v814, %v817
      %v822 = vsub.f32 %v814, %v818
      %v827 = vlaneseq
      %v828 = vshrl.u32 %v827, 7
      %v829 = vsub.s32 0, %v828
      %v830 = vrot.slane %v788, %v829
      %v831 = vlaneseq
      %v832 = vshrl.u32 %v831, 7
      %v833 = vsub.s32 0, %v832
      %v834 = vrot.slane %v789, %v833
      %v835 = vlaneseq
      %v836 = vshrl.u32 %v835, 7
      %v837 = vsub.s32 0, %v836
      %v838 = vrot.slane %v790, %v837
      %v839 = vlaneseq
      %v840 = vshrl.u32 %v839, 7
      %v841 = vsub.s32 0, %v840
      %v842 = vrot.slane %v791, %v841
      %v847 = vmul.f32 %v530, %v830
      %v848 = vmul.f32 %v535, %v834
      %v849 = vmul.f32 %v540, %v838
      %v850 = vmul.f32 %v545, %v842
      %v855 = vlaneseq
      %v856 = vshrl.u32 %v855, 7
      %v857 = vsub.s32 0, %v856
      %v858 = vrot.slane %v797, %v857
      %v859 = vlaneseq
      %v860 = vshrl.u32 %v859, 7
      %v861 = vsub.s32 0, %v860
      %v862 = vrot.slane %v798, %v861
      %v863 = vlaneseq
      %v864 = vshrl.u32 %v863, 7
      %v865 = vsub.s32 0, %v864
      %v866 = vrot.slane %v799, %v865
      %v867 = vlaneseq
      %v868 = vshrl.u32 %v867, 7
      %v869 = vsub.s32 0, %v868
      %v870 = vrot.slane %v800, %v869
      %v875 = vadd.f32 %v847, %v858
      %v876 = vadd.f32 %v848, %v862
      %v877 = vadd.f32 %v849, %v866
      %v878 = vadd.f32 %v850, %v870
      %v883 = vlaneseq
      %v884 = vshrl.u32 %v883, 7
      %v885 = vsub.s32 0, %v884
      %v886 = vrot.slane %v810, %v885
      %v887 = vlaneseq
      %v888 = vshrl.u32 %v887, 7
      %v889 = vsub.s32 0, %v888
      %v890 = vrot.slane %v811, %v889
      %v891 = vlaneseq
      %v892 = vshrl.u32 %v891, 7
      %v893 = vsub.s32 0, %v892
      %v894 = vrot.slane %v812, %v893
      %v895 = vlaneseq
      %v896 = vshrl.u32 %v895, 7
      %v897 = vsub.s32 0, %v896
      %v898 = vrot.slane %v813, %v897
      %v903 = vmul.f32 %v617, %v886
      %v904 = vmul.f32 %v622, %v890
      %v905 = vmul.f32 %v627, %v894
      %v906 = vmul.f32 %v632, %v898
      %v911 = vlaneseq
      %v912 = vshrl.u32 %v911, 7
      %v913 = vsub.s32 0, %v912
      %v914 = vrot.slane %v819, %v913
      %v915 = vlaneseq
      %v916 = vshrl.u32 %v915, 7
      %v917 = vsub.s32 0, %v916
      %v918 = vrot.slane %v820, %v917
      %v919 = vlaneseq
      %v920 = vshrl.u32 %v919, 7
      %v921 = vsub.s32 0, %v920
      %v922 = vrot.slane %v821, %v921
      %v923 = vlaneseq
      %v924 = vshrl.u32 %v923, 7
      %v925 = vsub.s32 0, %v924
      %v926 = vrot.slane %v822, %v925
      %v931 = vadd.f32 %v903, %v914
      %v932 = vadd.f32 %v904, %v918
      %v933 = vadd.f32 %v905, %v922
      %v934 = vadd.f32 %v906, %v926
      %v935 = vxor.u32 %v931, 2147483648
      %v936 = vxor.u32 %v932, 2147483648
      %v937 = vxor.u32 %v933, 2147483648
      %v938 = vxor.u32 %v934, 2147483648
      %v939 = vmul.f32 %v935, 1.442695
      %v940 = vpow.pop %v939
      %v941 = vmul.f32 %v936, 1.442695
      %v942 = vpow.pop %v941
      %v943 = vmul.f32 %v937, 1.442695
      %v944 = vpow.pop %v943
      %v945 = vmul.f32 %v938, 1.442695
      %v946 = vpow.pop %v945
      %v947 = vadd.f32 %v940, 1.0
      %v948 = vadd.f32 %v942, 1.0
      %v949 = vadd.f32 %v944, 1.0
      %v950 = vadd.f32 %v946, 1.0
      %v951 = vrcp.pop %v947
      %v952 = vmul.f32 1.0, %v951
      %v953 = vrcp.pop %v948
      %v954 = vmul.f32 1.0, %v953
      %v955 = vrcp.pop %v949
      %v956 = vmul.f32 1.0, %v955
      %v957 = vrcp.pop %v950
      %v958 = vmul.f32 1.0, %v957
      %v959 = vmul.f32 %v875, %v952
      %v960 = vmul.f32 %v876, %v954
      %v961 = vmul.f32 %v877, %v956
      %v962 = vmul.f32 %v878, %v958
      %v963 = vld [vmem:[%s7] sm:$0xff]
      %v964 = vld [vmem:[%s7 + $0x8] sm:$0xff]
      %v966 = vsel %vm450, %v959, 0
      %v969 = vsel %vm450, %v960, 0
      %v972 = vsel %vm450, %v961, 0
      %v975 = vsel %vm450, %v962, 0
      %977 = vmatprep.subr.mxu0 0.0
      %978 = vmatpush1.msra.mxu0 %v963
      %979 = vmatprep.subr.mxu0 0.0
      %980 = vmatpush1.msra.mxu0 %v964
      %981 = vmatprep.subr.mxu0 0.0
      %982 = vmatpush1.msra.mxu0 0.0
      %983 = vmatprep.subr.mxu0 0.0
      %984 = vmatpush1.msra.mxu0 0.0
      %985 = vmatprep.subr.mxu0 0.0
      %986 = vmatpush1.msra.mxu0 0.0
      %987 = vmatprep.subr.mxu0 0.0
      %988 = vmatpush1.msra.mxu0 0.0
      %989 = vmatprep.subr.mxu0 0.0
      %990 = vmatpush1.msra.mxu0 0.0
      %991 = vmatprep.subr.mxu0 0.0
      %992 = vmatpush1.msra.mxu0 0.0
      %993 = vmatprep.subr.mxu0 0.0
      %994 = vmatpush1.msra.mxu0 0.0
      %995 = vmatprep.subr.mxu0 0.0
      %996 = vmatpush1.msra.mxu0 0.0
      %997 = vmatprep.subr.mxu0 0.0
      %998 = vmatpush1.msra.mxu0 0.0
      %999 = vmatprep.subr.mxu0 0.0
      %1000 = vmatpush1.msra.mxu0 0.0
      %1001 = vmatprep.subr.mxu0 0.0
      %1002 = vmatpush1.msra.mxu0 0.0
      %1003 = vmatprep.subr.mxu0 0.0
      %1004 = vmatpush1.msra.mxu0 0.0
      %1005 = vmatprep.subr.mxu0 0.0
      %1006 = vmatpush1.msra.mxu0 0.0
      %1007 = vmatprep.subr.mxu0 0.0
      %1008 = vmatpush1.msra.mxu0 0.0
      %1009 = vmatprep.subr.mxu0 0.0
      %1010 = vmatpush1.msra.mxu0 0.0
      %1011 = vmatprep.subr.mxu0 0.0
      %1012 = vmatpush1.msra.mxu0 0.0
      %1013 = vmatprep.subr.mxu0 0.0
      %1014 = vmatpush1.msra.mxu0 0.0
      %1015 = vmatprep.subr.mxu0 0.0
      %1016 = vmatpush1.msra.mxu0 0.0
      %1017 = vmatprep.subr.mxu0 0.0
      %1018 = vmatpush1.msra.mxu0 0.0
      %1019 = vmatprep.subr.mxu0 0.0
      %1020 = vmatpush1.msra.mxu0 0.0
      %1021 = vmatprep.subr.mxu0 0.0
      %1022 = vmatpush1.msra.mxu0 0.0
      %1023 = vmatprep.subr.mxu0 0.0
      %1024 = vmatpush1.msra.mxu0 0.0
      %1025 = vmatprep.subr.mxu0 0.0
      %1026 = vmatpush1.msra.mxu0 0.0
      %1027 = vmatprep.subr.mxu0 0.0
      %1028 = vmatpush1.msra.mxu0 0.0
      %1029 = vmatprep.subr.mxu0 0.0
      %1030 = vmatpush1.msra.mxu0 0.0
      %1031 = vmatprep.subr.mxu0 0.0
      %1032 = vmatpush1.msra.mxu0 0.0
      %1033 = vmatprep.subr.mxu0 0.0
      %1034 = vmatpush1.msra.mxu0 0.0
      %1035 = vmatprep.subr.mxu0 0.0
      %1036 = vmatpush1.msra.mxu0 0.0
      %1037 = vmatprep.subr.mxu0 0.0
      %1038 = vmatpush1.msra.mxu0 0.0
      %1039 = vmatprep.subr.mxu0 0.0
      %1040 = vmatpush1.msra.mxu0 0.0
      %1041 = vmatprep.mubr.f32.mxu0 0.0
      %1042 = vmatmul.mubr.f32.gmra.mrb[0].mxu0 %v966
      %v1043 = vpop.f32.mrb[0].mxu0
      %v1044 = vadd.f32 0.0, %v1043
      %v1045 = vpop.f32.mrb[0].mxu0
      %1046 = vmatprep.mubr.f32.mxu0 0.0
      %1047 = vmatmul.mubr.f32.gmra.mrb[0].mxu0 %v969
      %v1048 = vpop.f32.mrb[0].mxu0
      %v1049 = vadd.f32 0.0, %v1048
      %v1050 = vpop.f32.mrb[0].mxu0
      %1051 = vmatprep.mubr.f32.mxu0 0.0
      %1052 = vmatmul.mubr.f32.gmra.mrb[0].mxu0 %v972
      %v1053 = vpop.f32.mrb[0].mxu0
      %v1054 = vadd.f32 0.0, %v1053
      %v1055 = vpop.f32.mrb[0].mxu0
      %1056 = vmatprep.mubr.f32.mxu0 0.0
      %1057 = vmatmul.mubr.f32.gmra.mrb[0].mxu0 %v975
      %v1058 = vpop.f32.mrb[0].mxu0
      %v1059 = vadd.f32 0.0, %v1058
      %v1060 = vpop.f32.mrb[0].mxu0
      %1061 = vdwg.mxu0
      %v1062 = vld [vmem:[%s8] sm:$0xff]
      %v1063 = vld [vmem:[%s8 + $0x8] sm:$0xff]
      %1064 = vmatprep.subr.mxu0 0.0
      %1065 = vmatpush1.msra.mxu0 %v1062
      %1066 = vmatprep.subr.mxu0 0.0
      %1067 = vmatpush1.msra.mxu0 %v1063
      %1068 = vmatprep.subr.mxu0 0.0
      %1069 = vmatpush1.msra.mxu0 0.0
      %1070 = vmatprep.subr.mxu0 0.0
      %1071 = vmatpush1.msra.mxu0 0.0
      %1072 = vmatprep.subr.mxu0 0.0
      %1073 = vmatpush1.msra.mxu0 0.0
      %1074 = vmatprep.subr.mxu0 0.0
      %1075 = vmatpush1.msra.mxu0 0.0
      %1076 = vmatprep.subr.mxu0 0.0
      %1077 = vmatpush1.msra.mxu0 0.0
      %1078 = vmatprep.subr.mxu0 0.0
      %1079 = vmatpush1.msra.mxu0 0.0
      %1080 = vmatprep.subr.mxu0 0.0
      %1081 = vmatpush1.msra.mxu0 0.0
      %1082 = vmatprep.subr.mxu0 0.0
      %1083 = vmatpush1.msra.mxu0 0.0
      %1084 = vmatprep.subr.mxu0 0.0
      %1085 = vmatpush1.msra.mxu0 0.0
      %1086 = vmatprep.subr.mxu0 0.0
      %1087 = vmatpush1.msra.mxu0 0.0
      %1088 = vmatprep.subr.mxu0 0.0
      %1089 = vmatpush1.msra.mxu0 0.0
      %1090 = vmatprep.subr.mxu0 0.0
      %1091 = vmatpush1.msra.mxu0 0.0
      %1092 = vmatprep.subr.mxu0 0.0
      %1093 = vmatpush1.msra.mxu0 0.0
      %1094 = vmatprep.subr.mxu0 0.0
      %1095 = vmatpush1.msra.mxu0 0.0
      %1096 = vmatprep.subr.mxu0 0.0
      %1097 = vmatpush1.msra.mxu0 0.0
      %1098 = vmatprep.subr.mxu0 0.0
      %1099 = vmatpush1.msra.mxu0 0.0
      %1100 = vmatprep.subr.mxu0 0.0
      %1101 = vmatpush1.msra.mxu0 0.0
      %1102 = vmatprep.subr.mxu0 0.0
      %1103 = vmatpush1.msra.mxu0 0.0
      %1104 = vmatprep.subr.mxu0 0.0
      %1105 = vmatpush1.msra.mxu0 0.0
      %1106 = vmatprep.subr.mxu0 0.0
      %1107 = vmatpush1.msra.mxu0 0.0
      %1108 = vmatprep.subr.mxu0 0.0
      %1109 = vmatpush1.msra.mxu0 0.0
      %1110 = vmatprep.subr.mxu0 0.0
      %1111 = vmatpush1.msra.mxu0 0.0
      %1112 = vmatprep.subr.mxu0 0.0
      %1113 = vmatpush1.msra.mxu0 0.0
      %1114 = vmatprep.subr.mxu0 0.0
      %1115 = vmatpush1.msra.mxu0 0.0
      %1116 = vmatprep.subr.mxu0 0.0
      %1117 = vmatpush1.msra.mxu0 0.0
      %1118 = vmatprep.subr.mxu0 0.0
      %1119 = vmatpush1.msra.mxu0 0.0
      %1120 = vmatprep.subr.mxu0 0.0
      %1121 = vmatpush1.msra.mxu0 0.0
      %1122 = vmatprep.subr.mxu0 0.0
      %1123 = vmatpush1.msra.mxu0 0.0
      %1124 = vmatprep.subr.mxu0 0.0
      %1125 = vmatpush1.msra.mxu0 0.0
      %1126 = vmatprep.subr.mxu0 0.0
      %1127 = vmatpush1.msra.mxu0 0.0
      %1128 = vmatprep.mubr.f32.mxu0 0.0
      %1129 = vmatmul.mubr.f32.gmra.mrb[0].mxu0 %v966
      %v1130 = vpop.f32.mrb[0].mxu0
      %v1131 = vadd.f32 0.0, %v1130
      %v1132 = vpop.f32.mrb[0].mxu0
      %1133 = vmatprep.mubr.f32.mxu0 0.0
      %1134 = vmatmul.mubr.f32.gmra.mrb[0].mxu0 %v969
      %v1135 = vpop.f32.mrb[0].mxu0
      %v1136 = vadd.f32 0.0, %v1135
      %v1137 = vpop.f32.mrb[0].mxu0
      %1138 = vmatprep.mubr.f32.mxu0 0.0
      %1139 = vmatmul.mubr.f32.gmra.mrb[0].mxu0 %v972
      %v1140 = vpop.f32.mrb[0].mxu0
      %v1141 = vadd.f32 0.0, %v1140
      %v1142 = vpop.f32.mrb[0].mxu0
      %1143 = vmatprep.mubr.f32.mxu0 0.0
      %1144 = vmatmul.mubr.f32.gmra.mrb[0].mxu0 %v975
      %v1145 = vpop.f32.mrb[0].mxu0
      %v1146 = vadd.f32 0.0, %v1145
      %v1147 = vpop.f32.mrb[0].mxu0
      %1148 = vdwg.mxu0
      %v1149 = vsel %vm450, %v1044, 0.0
      %v1150 = vrot.slane %v1149, 4
      %v1151 = vadd.f32 %v1149, %v1150
      %v1152 = vrot.slane %v1151, 2
      %v1153 = vadd.f32 %v1151, %v1152
      %v1154 = vrot.slane %v1153, 1
      %v1155 = vadd.f32 %v1153, %v1154
      %v1156 = vsel %vm450, %v1049, 0.0
      %v1157 = vrot.slane %v1156, 4
      %v1158 = vadd.f32 %v1156, %v1157
      %v1159 = vrot.slane %v1158, 2
      %v1160 = vadd.f32 %v1158, %v1159
      %v1161 = vrot.slane %v1160, 1
      %v1162 = vadd.f32 %v1160, %v1161
      %v1163 = vsel %vm450, %v1054, 0.0
      %v1164 = vrot.slane %v1163, 4
      %v1165 = vadd.f32 %v1163, %v1164
      %v1166 = vrot.slane %v1165, 2
      %v1167 = vadd.f32 %v1165, %v1166
      %v1168 = vrot.slane %v1167, 1
      %v1169 = vadd.f32 %v1167, %v1168
      %v1170 = vsel %vm450, %v1059, 0.0
      %v1171 = vrot.slane %v1170, 4
      %v1172 = vadd.f32 %v1170, %v1171
      %v1173 = vrot.slane %v1172, 2
      %v1174 = vadd.f32 %v1172, %v1173
      %v1175 = vrot.slane %v1174, 1
      %v1176 = vadd.f32 %v1174, %v1175
      %v1177 = vmul.f32 %v1155, 0.125
      %v1178 = vmul.f32 %v1162, 0.125
      %v1179 = vmul.f32 %v1169, 0.125
      %v1180 = vmul.f32 %v1176, 0.125
      %v1181 = vsub.f32 %v1044, %v1177
      %v1182 = vsub.f32 %v1049, %v1178
      %v1183 = vsub.f32 %v1054, %v1179
      %v1184 = vsub.f32 %v1059, %v1180
      %v1185 = vmul.f32 %v1181, %v1181
      %v1186 = vmul.f32 %v1182, %v1182
      %v1187 = vmul.f32 %v1183, %v1183
      %v1188 = vmul.f32 %v1184, %v1184
      %v1189 = vsel %vm450, %v1185, 0.0
      %v1190 = vrot.slane %v1189, 4
      %v1191 = vadd.f32 %v1189, %v1190
      %v1192 = vrot.slane %v1191, 2
      %v1193 = vadd.f32 %v1191, %v1192
      %v1194 = vrot.slane %v1193, 1
      %v1195 = vadd.f32 %v1193, %v1194
      %v1196 = vsel %vm450, %v1186, 0.0
      %v1197 = vrot.slane %v1196, 4
      %v1198 = vadd.f32 %v1196, %v1197
      %v1199 = vrot.slane %v1198, 2
      %v1200 = vadd.f32 %v1198, %v1199
      %v1201 = vrot.slane %v1200, 1
      %v1202 = vadd.f32 %v1200, %v1201
      %v1203 = vsel %vm450, %v1187, 0.0
      %v1204 = vrot.slane %v1203, 4
      %v1205 = vadd.f32 %v1203, %v1204
      %v1206 = vrot.slane %v1205, 2
      %v1207 = vadd.f32 %v1205, %v1206
      %v1208 = vrot.slane %v1207, 1
      %v1209 = vadd.f32 %v1207, %v1208
      %v1210 = vsel %vm450, %v1188, 0.0
      %v1211 = vrot.slane %v1210, 4
      %v1212 = vadd.f32 %v1210, %v1211
      %v1213 = vrot.slane %v1212, 2
      %v1214 = vadd.f32 %v1212, %v1213
      %v1215 = vrot.slane %v1214, 1
      %v1216 = vadd.f32 %v1214, %v1215
      %v1217 = vmul.f32 %v1195, 0.125
      %v1218 = vmul.f32 %v1202, 0.125
      %v1219 = vmul.f32 %v1209, 0.125
      %v1220 = vmul.f32 %v1216, 0.125
      %v1221 = vsel %vm450, %v1131, 0.0
      %v1222 = vrot.slane %v1221, 4
      %v1223 = vadd.f32 %v1221, %v1222
      %v1224 = vrot.slane %v1223, 2
      %v1225 = vadd.f32 %v1223, %v1224
      %v1226 = vrot.slane %v1225, 1
      %v1227 = vadd.f32 %v1225, %v1226
      %v1228 = vsel %vm450, %v1136, 0.0
      %v1229 = vrot.slane %v1228, 4
      %v1230 = vadd.f32 %v1228, %v1229
      %v1231 = vrot.slane %v1230, 2
      %v1232 = vadd.f32 %v1230, %v1231
      %v1233 = vrot.slane %v1232, 1
      %v1234 = vadd.f32 %v1232, %v1233
      %v1235 = vsel %vm450, %v1141, 0.0
      %v1236 = vrot.slane %v1235, 4
      %v1237 = vadd.f32 %v1235, %v1236
      %v1238 = vrot.slane %v1237, 2
      %v1239 = vadd.f32 %v1237, %v1238
      %v1240 = vrot.slane %v1239, 1
      %v1241 = vadd.f32 %v1239, %v1240
      %v1242 = vsel %vm450, %v1146, 0.0
      %v1243 = vrot.slane %v1242, 4
      %v1244 = vadd.f32 %v1242, %v1243
      %v1245 = vrot.slane %v1244, 2
      %v1246 = vadd.f32 %v1244, %v1245
      %v1247 = vrot.slane %v1246, 1
      %v1248 = vadd.f32 %v1246, %v1247
      %v1249 = vmul.f32 %v1227, 0.125
      %v1250 = vmul.f32 %v1234, 0.125
      %v1251 = vmul.f32 %v1241, 0.125
      %v1252 = vmul.f32 %v1248, 0.125
      %v1253 = vsub.f32 %v1131, %v1249
      %v1254 = vsub.f32 %v1136, %v1250
      %v1255 = vsub.f32 %v1141, %v1251
      %v1256 = vsub.f32 %v1146, %v1252
      %v1257 = vmul.f32 %v1253, %v1253
      %v1258 = vmul.f32 %v1254, %v1254
      %v1259 = vmul.f32 %v1255, %v1255
      %v1260 = vmul.f32 %v1256, %v1256
      %v1261 = vsel %vm450, %v1257, 0.0
      %v1262 = vrot.slane %v1261, 4
      %v1263 = vadd.f32 %v1261, %v1262
      %v1264 = vrot.slane %v1263, 2
      %v1265 = vadd.f32 %v1263, %v1264
      %v1266 = vrot.slane %v1265, 1
      %v1267 = vadd.f32 %v1265, %v1266
      %v1268 = vsel %vm450, %v1258, 0.0
      %v1269 = vrot.slane %v1268, 4
      %v1270 = vadd.f32 %v1268, %v1269
      %v1271 = vrot.slane %v1270, 2
      %v1272 = vadd.f32 %v1270, %v1271
      %v1273 = vrot.slane %v1272, 1
      %v1274 = vadd.f32 %v1272, %v1273
      %v1275 = vsel %vm450, %v1259, 0.0
      %v1276 = vrot.slane %v1275, 4
      %v1277 = vadd.f32 %v1275, %v1276
      %v1278 = vrot.slane %v1277, 2
      %v1279 = vadd.f32 %v1277, %v1278
      %v1280 = vrot.slane %v1279, 1
      %v1281 = vadd.f32 %v1279, %v1280
      %v1282 = vsel %vm450, %v1260, 0.0
      %v1283 = vrot.slane %v1282, 4
      %v1284 = vadd.f32 %v1282, %v1283
      %v1285 = vrot.slane %v1284, 2
      %v1286 = vadd.f32 %v1284, %v1285
      %v1287 = vrot.slane %v1286, 1
      %v1288 = vadd.f32 %v1286, %v1287
      %v1289 = vmul.f32 %v1267, 0.125
      %v1290 = vmul.f32 %v1274, 0.125
      %v1291 = vmul.f32 %v1281, 0.125
      %v1292 = vmul.f32 %v1288, 0.125
      %v1293 = vld [vmem:[%s9] sm:$0x1]
      %v1294 = vadd.f32 %v1217, 1e-05
      %v1295 = vadd.f32 %v1218, 1e-05
      %v1296 = vadd.f32 %v1219, 1e-05
      %v1297 = vadd.f32 %v1220, 1e-05
      %v1298 = vrsqrt.pop %v1294
      %v1299 = vrsqrt.pop %v1295
      %v1300 = vrsqrt.pop %v1296
      %v1301 = vrsqrt.pop %v1297
      %v1302 = vmul.f32 %v1293, %v1298
      %v1303 = vmul.f32 %v1293, %v1299
      %v1304 = vmul.f32 %v1293, %v1300
      %v1305 = vmul.f32 %v1293, %v1301
      %v1306 = vld [vmem:[%s11] sm:$0x1]
      %v1307 = vmul.f32 %v1177, %v1302
      %v1308 = vmul.f32 %v1178, %v1303
      %v1309 = vmul.f32 %v1179, %v1304
      %v1310 = vmul.f32 %v1180, %v1305
      %v1311 = vsub.f32 %v1306, %v1307
      %v1312 = vsub.f32 %v1306, %v1308
      %v1313 = vsub.f32 %v1306, %v1309
      %v1314 = vsub.f32 %v1306, %v1310
      %v1315 = vld [vmem:[%s10] sm:$0x1]
      %v1316 = vadd.f32 %v1289, 1e-05
      %v1317 = vadd.f32 %v1290, 1e-05
      %v1318 = vadd.f32 %v1291, 1e-05
      %v1319 = vadd.f32 %v1292, 1e-05
      %v1320 = vrsqrt.pop %v1316
      %v1321 = vrsqrt.pop %v1317
      %v1322 = vrsqrt.pop %v1318
      %v1323 = vrsqrt.pop %v1319
      %v1324 = vmul.f32 %v1315, %v1320
      %v1325 = vmul.f32 %v1315, %v1321
      %v1326 = vmul.f32 %v1315, %v1322
      %v1327 = vmul.f32 %v1315, %v1323
      %v1328 = vld [vmem:[%s12] sm:$0x1]
      %v1329 = vmul.f32 %v1249, %v1324
      %v1330 = vmul.f32 %v1250, %v1325
      %v1331 = vmul.f32 %v1251, %v1326
      %v1332 = vmul.f32 %v1252, %v1327
      %v1333 = vsub.f32 %v1328, %v1329
      %v1334 = vsub.f32 %v1328, %v1330
      %v1335 = vsub.f32 %v1328, %v1331
      %v1336 = vsub.f32 %v1328, %v1332
      %v1341 = vlaneseq
      %v1342 = vshrl.u32 %v1341, 7
      %v1343 = vsub.s32 0, %v1342
      %v1344 = vrot.slane %v1302, %v1343
      %v1345 = vlaneseq
      %v1346 = vshrl.u32 %v1345, 7
      %v1347 = vsub.s32 0, %v1346
      %v1348 = vrot.slane %v1303, %v1347
      %v1349 = vlaneseq
      %v1350 = vshrl.u32 %v1349, 7
      %v1351 = vsub.s32 0, %v1350
      %v1352 = vrot.slane %v1304, %v1351
      %v1353 = vlaneseq
      %v1354 = vshrl.u32 %v1353, 7
      %v1355 = vsub.s32 0, %v1354
      %v1356 = vrot.slane %v1305, %v1355
      %v1361 = vmul.f32 %v1044, %v1344
      %v1362 = vmul.f32 %v1049, %v1348
      %v1363 = vmul.f32 %v1054, %v1352
      %v1364 = vmul.f32 %v1059, %v1356
      %v1369 = vlaneseq
      %v1370 = vshrl.u32 %v1369, 7
      %v1371 = vsub.s32 0, %v1370
      %v1372 = vrot.slane %v1311, %v1371
      %v1373 = vlaneseq
      %v1374 = vshrl.u32 %v1373, 7
      %v1375 = vsub.s32 0, %v1374
      %v1376 = vrot.slane %v1312, %v1375
      %v1377 = vlaneseq
      %v1378 = vshrl.u32 %v1377, 7
      %v1379 = vsub.s32 0, %v1378
      %v1380 = vrot.slane %v1313, %v1379
      %v1381 = vlaneseq
      %v1382 = vshrl.u32 %v1381, 7
      %v1383 = vsub.s32 0, %v1382
      %v1384 = vrot.slane %v1314, %v1383
      %v1389 = vadd.f32 %v1361, %v1372
      %v1390 = vadd.f32 %v1362, %v1376
      %v1391 = vadd.f32 %v1363, %v1380
      %v1392 = vadd.f32 %v1364, %v1384
      %v1397 = vlaneseq
      %v1398 = vshrl.u32 %v1397, 7
      %v1399 = vsub.s32 0, %v1398
      %v1400 = vrot.slane %v1324, %v1399
      %v1401 = vlaneseq
      %v1402 = vshrl.u32 %v1401, 7
      %v1403 = vsub.s32 0, %v1402
      %v1404 = vrot.slane %v1325, %v1403
      %v1405 = vlaneseq
      %v1406 = vshrl.u32 %v1405, 7
      %v1407 = vsub.s32 0, %v1406
      %v1408 = vrot.slane %v1326, %v1407
      %v1409 = vlaneseq
      %v1410 = vshrl.u32 %v1409, 7
      %v1411 = vsub.s32 0, %v1410
      %v1412 = vrot.slane %v1327, %v1411
      %v1417 = vmul.f32 %v1131, %v1400
      %v1418 = vmul.f32 %v1136, %v1404
      %v1419 = vmul.f32 %v1141, %v1408
      %v1420 = vmul.f32 %v1146, %v1412
      %v1425 = vlaneseq
      %v1426 = vshrl.u32 %v1425, 7
      %v1427 = vsub.s32 0, %v1426
      %v1428 = vrot.slane %v1333, %v1427
      %v1429 = vlaneseq
      %v1430 = vshrl.u32 %v1429, 7
      %v1431 = vsub.s32 0, %v1430
      %v1432 = vrot.slane %v1334, %v1431
      %v1433 = vlaneseq
      %v1434 = vshrl.u32 %v1433, 7
      %v1435 = vsub.s32 0, %v1434
      %v1436 = vrot.slane %v1335, %v1435
      %v1437 = vlaneseq
      %v1438 = vshrl.u32 %v1437, 7
      %v1439 = vsub.s32 0, %v1438
      %v1440 = vrot.slane %v1336, %v1439
      %v1445 = vadd.f32 %v1417, %v1428
      %v1446 = vadd.f32 %v1418, %v1432
      %v1447 = vadd.f32 %v1419, %v1436
      %v1448 = vadd.f32 %v1420, %v1440
      %v1449 = vxor.u32 %v1445, 2147483648
      %v1450 = vxor.u32 %v1446, 2147483648
      %v1451 = vxor.u32 %v1447, 2147483648
      %v1452 = vxor.u32 %v1448, 2147483648
      %v1453 = vmul.f32 %v1449, 1.442695
      %v1454 = vpow.pop %v1453
      %v1455 = vmul.f32 %v1450, 1.442695
      %v1456 = vpow.pop %v1455
      %v1457 = vmul.f32 %v1451, 1.442695
      %v1458 = vpow.pop %v1457
      %v1459 = vmul.f32 %v1452, 1.442695
      %v1460 = vpow.pop %v1459
      %v1461 = vadd.f32 %v1454, 1.0
      %v1462 = vadd.f32 %v1456, 1.0
      %v1463 = vadd.f32 %v1458, 1.0
      %v1464 = vadd.f32 %v1460, 1.0
      %v1465 = vrcp.pop %v1461
      %v1466 = vmul.f32 1.0, %v1465
      %v1467 = vrcp.pop %v1462
      %v1468 = vmul.f32 1.0, %v1467
      %v1469 = vrcp.pop %v1463
      %v1470 = vmul.f32 1.0, %v1469
      %v1471 = vrcp.pop %v1464
      %v1472 = vmul.f32 1.0, %v1471
      %v1473 = vmul.f32 %v1389, %v1466
      %v1474 = vmul.f32 %v1390, %v1468
      %v1475 = vmul.f32 %v1391, %v1470
      %v1476 = vmul.f32 %v1392, %v1472
      %v1477 = vadd.f32 %v959, %v1473
      %v1478 = vadd.f32 %v960, %v1474
      %v1479 = vadd.f32 %v961, %v1475
      %v1480 = vadd.f32 %v962, %v1476
      %v1481 = vmul.f32 %v1477, 0.70710677
      %v1482 = vmul.f32 %v1478, 0.70710677
      %v1483 = vmul.f32 %v1479, 0.70710677
      %v1484 = vmul.f32 %v1480, 0.70710677
      %1485 = vst.msk [vmem:[%s442] sm:$0xff] %vm450, %v1481
      %1486 = vst.msk [vmem:[%s442 + $0x8] sm:$0xff] %vm450, %v1482
      %1487 = vst.msk [vmem:[%s442 + $0x10] sm:$0xff] %vm450, %v1483
      %1488 = vst.msk [vmem:[%s442 + $0x18] sm:$0xff] %vm450, %v1484
      %s1489 = smul.u32 4, %s24
      %p1490 = scmp.lt.s32.totalorder %s1489, 7
      %s1491 = scalar_select %p1490, %s1489, 7
      %s1492 = smul.addr %s1491, 8
      %s1493 = scalar_lea.vmem %s13, %s1492
      // Predicated region
      $region73: #{tpu_custom_call.1} parent=71 // pred_check
        %p1494 = pneg %p320
      $region74: #{tpu_custom_call.1} parent=71 // pred_check_branch
        %1496 = sbr.rel (%p1494) target = $region76
      $region75: #{tpu_custom_call.1} parent=71 // pred_region
        %s1497 = smul.u32 4, %s24
      $region76: #{tpu_custom_call.1} parent=71 // pred_fallthru
        _
    $region72: #{tpu_custom_call.1} parent=5 // pred_fallthru
      _
    %p1498 = scmp.le.s32.totalorder 2, %s19
    // Predicated region
    $region77: #{tpu_custom_call.1} parent=5 // pred_check
      %p1499 = pneg %p1498
    $region78: #{tpu_custom_call.1} parent=5 // pred_check_branch
      %1501 = sbr.rel (%p1499) target = $region80
    $region79: #{tpu_custom_call.1} parent=5 // pred_region
      %s1502 = ssub.s32 %s19, 2
      // Predicated region
      $region81: #{tpu_custom_call.1} parent=79 // pred_check
        %p1503 = pneg %p326
      $region82: #{tpu_custom_call.1} parent=79 // pred_check_branch
        %1505 = sbr.rel (%p1503) target = $region84
      $region83: #{tpu_custom_call.1} parent=79 // pred_region
        %s1506 = smul.u32 4, %s25
        %p1507 = scmp.lt.s32.totalorder %s1506, 7
        %s1508 = scalar_select %p1507, %s1506, 7
        %s1509 = smul.addr %s1508, 8
        %s1510 = scalar_lea.vmem %s13, %s1509
      $region84: #{tpu_custom_call.1} parent=79 // pred_fallthru
        _
    $region80: #{tpu_custom_call.1} parent=5 // pred_fallthru
      _
  $region6: #{tpu_custom_call.1} parent=0 // loop_footer
    %s23 = sadd.s32 1, %s19
  $region7: #{tpu_custom_call.1} parent=0 // loop_footer_branch
    %18 = sbr.rel target = $region3
  $region8: #{tpu_custom_call.1} parent=0 // loop_exit
    _

</llo_original>
